<compile_context>
chip_gen: v7x
topology: tpu7x:2x2x1
jax: 0.10.0
libtpu: 0.0.40
codegen_flags: <defaults>
</compile_context>

<pallas_src>
import jax
import jax.numpy as jnp
from jax.experimental import pallas as pl
from jax.experimental.pallas import tpu as pltpu

# ---- small synthetic BERT config (real chinese BERT: H=768, L=12, S<=512) ----
B = 2           # batch
S = 8           # sequence length
H = 128         # hidden size (lane-dense: multiple of 128)
NH = 2          # attention heads
HD = H // NH    # head dim
INTER = 256     # FFN intermediate size (lane-dense)
LAYERS = 3      # transformer layers
VOCAB = 64
N = B * S       # tokens
LN_EPS = 1e-12


# ----------------------------- fused kernel ----------------------------------

def fused_bert_kernel(emb_ref, emb_g_ref, emb_b_ref, mask_ref,
                      wqkv_ref, bqkv_ref, wo_ref, bo_ref,
                      wi_ref, bi_ref, wf_ref, bf_ref,
                      ln1_g_ref, ln1_b_ref, ln2_g_ref, ln2_b_ref,
                      penult_ref, cls_ref, feat_ref,
                      h_ref):
    layer = pl.program_id(0)

    def layernorm(x, g, b):
        mu = jnp.mean(x, axis=-1, keepdims=True)
        var = jnp.mean((x - mu) ** 2, axis=-1, keepdims=True)
        inv = jax.lax.rsqrt(var + LN_EPS)
        return (x - mu) * inv * g + b

    # layer 0: embedding LayerNorm (no residual); activation becomes VMEM-resident.
    @pl.when(layer == 0)
    def _():
        h_ref[...] = layernorm(emb_ref[...], emb_g_ref[...], emb_b_ref[...])

    h = h_ref[...]                                  # [N, H] f32, carried across layers
    h_bf = h.astype(jnp.bfloat16)

    # ---- fused QKV projection (one MXU pass, 3x wider N) ----
    qkv = jnp.dot(h_bf, wqkv_ref[0],
                  preferred_element_type=jnp.float32) + bqkv_ref[0]   # [N, 3H] f32

    mbias = mask_ref[...]                           # [B, 1, S], precomputed (1-m)*-1e9
    scale = 1.0 / (float(HD) ** 0.5)

    # ---- multi-head attention (static head loop, NH small) ----
    ctx_heads = []
    for hh in range(NH):
        q = qkv[:, hh * HD:(hh + 1) * HD].reshape(B, S, HD).astype(jnp.bfloat16)
        k = qkv[:, H + hh * HD:H + (hh + 1) * HD].reshape(B, S, HD).astype(jnp.bfloat16)
        v = qkv[:, 2 * H + hh * HD:2 * H + (hh + 1) * HD].reshape(B, S, HD).astype(jnp.bfloat16)

        s = jnp.einsum("bqd,bkd->bqk", q, k,
                       preferred_element_type=jnp.float32)            # [B, S, S] f32
        s = s * scale + mbias
        s = s - jnp.max(s, axis=-1, keepdims=True)
        p = jnp.exp(s)
        p = p * pl.reciprocal(jnp.sum(p, axis=-1, keepdims=True), approx=True)
        o = jnp.einsum("bqk,bkd->bqd", p.astype(jnp.bfloat16), v,
                       preferred_element_type=jnp.float32)            # [B, S, HD] f32
        ctx_heads.append(o.reshape(N, HD))
    ctx = jnp.concatenate(ctx_heads, axis=-1)                          # [N, H]

    # ---- attention output projection + residual + LN ----
    attn_out = jnp.dot(ctx.astype(jnp.bfloat16), wo_ref[0],
                       preferred_element_type=jnp.float32) + bo_ref[0]
    h1 = layernorm(attn_out + h, ln1_g_ref[0], ln1_b_ref[0])

    # ---- FFN ----
    inter = jnp.dot(h1.astype(jnp.bfloat16), wi_ref[0],
                    preferred_element_type=jnp.float32) + bi_ref[0]
    c = 0.7978845608028654                                             # sqrt(2/pi)
    inter = 0.5 * inter * (1.0 + jnp.tanh(c * (inter + 0.044715 * inter * inter * inter)))
    ffn = jnp.dot(inter.astype(jnp.bfloat16), wf_ref[0],
                  preferred_element_type=jnp.float32) + bf_ref[0]
    h_new = layernorm(ffn + h1, ln2_g_ref[0], ln2_b_ref[0])
    h_ref[...] = h_new

    # ---- epilogue: hidden_states[-2] + CLS row + pooled mean, fused ----
    # hidden_states = [embeddings, layer_0, ..., layer_{L-1}]; [-2] == layer L-2 output.
    @pl.when(layer == LAYERS - 2)
    def _():
        penult_ref[...] = h_new
        cls_ref[...] = h_new[0:1, :]                                   # token (b=0, s=0)
        # mean over dim=1 then dim=0 with equal S per batch == global token mean
        feat_ref[...] = jnp.mean(h_new, axis=0, keepdims=True)


# --------------------------- parameters (synthetic) ----------------------------

def init_params(key):
    keys = iter(jax.random.split(key, 16))

    def dense(shape):
        return (0.02 * jax.random.normal(next(keys), shape, jnp.float32)
                ).astype(jnp.bfloat16)

    return {
        "word_emb": 0.02 * jax.random.normal(next(keys), (VOCAB, H), jnp.float32),
        "pos_emb": 0.02 * jax.random.normal(next(keys), (S, H), jnp.float32),
        "seg_emb": 0.02 * jax.random.normal(next(keys), (2, H), jnp.float32),
        "emb_ln_g": jnp.ones((1, H), jnp.float32),
        "emb_ln_b": jnp.zeros((1, H), jnp.float32),
        # per-layer weights stacked on a leading LAYERS axis (streamed by BlockSpec)
        "w_qkv": dense((LAYERS, H, 3 * H)),
        "b_qkv": jnp.zeros((LAYERS, 1, 3 * H), jnp.float32),
        "wo": dense((LAYERS, H, H)),
        "bo": jnp.zeros((LAYERS, 1, H), jnp.float32),
        "wi": dense((LAYERS, H, INTER)),
        "bi": jnp.zeros((LAYERS, 1, INTER), jnp.float32),
        "wf": dense((LAYERS, INTER, H)),
        "bf": jnp.zeros((LAYERS, 1, H), jnp.float32),
        "ln1_g": jnp.ones((LAYERS, 1, H), jnp.float32),
        "ln1_b": jnp.zeros((LAYERS, 1, H), jnp.float32),
        "ln2_g": jnp.ones((LAYERS, 1, H), jnp.float32),
        "ln2_b": jnp.zeros((LAYERS, 1, H), jnp.float32),
    }


# ------------------------------- forward pass ----------------------------------

def _const_spec(shape):
    return pl.BlockSpec(shape, lambda l, _n=len(shape): (0,) * _n)


def _layer_spec(shape):
    return pl.BlockSpec(shape, lambda l, _n=len(shape): (l,) + (0,) * (_n - 1))


def text_extractor_forward(params, tokens, segments, masks):
    # Embedding gathers are glue (plain JAX); everything else is one fused kernel.
    emb = (jnp.take(params["word_emb"], tokens, axis=0)
           + jnp.take(params["seg_emb"], segments, axis=0)
           + params["pos_emb"][None, :, :]).reshape(N, H).astype(jnp.float32)

    # hoisted additive attention mask bias: 0 for real tokens, -1e9 for padding
    mask_bias = ((1.0 - masks.astype(jnp.float32)) * (-1e9)).reshape(B, 1, S)

    in_specs = [
        _const_spec((N, H)),            # emb
        _const_spec((1, H)),            # emb_ln_g
        _const_spec((1, H)),            # emb_ln_b
        _const_spec((B, 1, S)),         # mask bias
        _layer_spec((1, H, 3 * H)),     # w_qkv
        _layer_spec((1, 1, 3 * H)),     # b_qkv
        _layer_spec((1, H, H)),         # wo
        _layer_spec((1, 1, H)),         # bo
        _layer_spec((1, H, INTER)),     # wi
        _layer_spec((1, 1, INTER)),     # bi
        _layer_spec((1, INTER, H)),     # wf
        _layer_spec((1, 1, H)),         # bf
        _layer_spec((1, 1, H)),         # ln1_g
        _layer_spec((1, 1, H)),         # ln1_b
        _layer_spec((1, 1, H)),         # ln2_g
        _layer_spec((1, 1, H)),         # ln2_b
    ]
    out_specs = (
        pl.BlockSpec((N, H), lambda l: (0, 0)),   # penultimate hidden state
        pl.BlockSpec((1, H), lambda l: (0, 0)),   # CLS row of sample 0
        pl.BlockSpec((1, H), lambda l: (0, 0)),   # pooled features
    )
    out_shape = (
        jax.ShapeDtypeStruct((N, H), jnp.float32),
        jax.ShapeDtypeStruct((1, H), jnp.float32),
        jax.ShapeDtypeStruct((1, H), jnp.float32),
    )

    penult, cls_row, feat = pl.pallas_call(
        fused_bert_kernel,
        grid=(LAYERS,),
        in_specs=in_specs,
        out_specs=out_specs,
        out_shape=out_shape,
        scratch_shapes=[pltpu.VMEM((N, H), jnp.float32)],   # resident activation
        compiler_params=pltpu.CompilerParams(
            dimension_semantics=("arbitrary",)),
    )(emb, params["emb_ln_g"], params["emb_ln_b"], mask_bias,
      params["w_qkv"], params["b_qkv"], params["wo"], params["bo"],
      params["wi"], params["bi"], params["wf"], params["bf"],
      params["ln1_g"], params["ln1_b"], params["ln2_g"], params["ln2_b"])

    penult = penult.reshape(B, S, H)      # feat_cls (all tokens, all samples)
    return cls_row, penult, feat[0]       # ([1,H], [B,S,H], [H])


# ----------------------------------- main ---------------------------------------

if __name__ == "__main__":
    key = jax.random.PRNGKey(0)
    pkey, tkey = jax.random.split(key)
    params = init_params(pkey)

    tokens = jax.random.randint(tkey, (B, S), 0, VOCAB, dtype=jnp.int32)
    segments = jnp.zeros((B, S), jnp.int32)
    masks = jnp.ones((B, S), jnp.int32)

    out_cls, out_feat_all, out_features = text_extractor_forward(
        params, tokens, segments, masks)
    jax.block_until_ready((out_cls, out_feat_all, out_features))

    assert out_cls.shape == (1, H)
    assert out_feat_all.shape == (B, S, H)
    assert out_features.shape == (H,)
    assert bool(jnp.all(jnp.isfinite(out_feat_all)))
    assert bool(jnp.all(jnp.isfinite(out_features)))
    # CLS row must match row (0, 0) of the penultimate hidden state
    assert bool(jnp.allclose(out_cls[0], out_feat_all[0, 0], atol=1e-5))
    print("KERNEL_OK")
</pallas_src>

<mosaic_0001>
module attributes {stable_mosaic.version = 11 : i64} {
  func.func @fused_bert_kernel(%arg0: i32, %arg1: memref<16x128xf32, #tpu.memory_space<vmem>>, %arg2: memref<1x128xf32, #tpu.memory_space<vmem>>, %arg3: memref<1x128xf32, #tpu.memory_space<vmem>>, %arg4: memref<2x1x8xf32, #tpu.memory_space<vmem>>, %arg5: memref<1x128x384xbf16, #tpu.memory_space<vmem>>, %arg6: memref<1x1x384xf32, #tpu.memory_space<vmem>>, %arg7: memref<1x128x128xbf16, #tpu.memory_space<vmem>>, %arg8: memref<1x1x128xf32, #tpu.memory_space<vmem>>, %arg9: memref<1x128x256xbf16, #tpu.memory_space<vmem>>, %arg10: memref<1x1x256xf32, #tpu.memory_space<vmem>>, %arg11: memref<1x256x128xbf16, #tpu.memory_space<vmem>>, %arg12: memref<1x1x128xf32, #tpu.memory_space<vmem>>, %arg13: memref<1x1x128xf32, #tpu.memory_space<vmem>>, %arg14: memref<1x1x128xf32, #tpu.memory_space<vmem>>, %arg15: memref<1x1x128xf32, #tpu.memory_space<vmem>>, %arg16: memref<1x1x128xf32, #tpu.memory_space<vmem>>, %arg17: memref<16x128xf32, #tpu.memory_space<vmem>>, %arg18: memref<1x128xf32, #tpu.memory_space<vmem>>, %arg19: memref<1x128xf32, #tpu.memory_space<vmem>>, %arg20: memref<16x128xf32, #tpu.memory_space<vmem>>) attributes {dimension_semantics = [#tpu.dimension_semantics<arbitrary>], iteration_bounds = array<i64: 3>, scalar_prefetch = 0 : i64, scratch_operands = 1 : i64, tpu.core_type = #tpu.core_type<tc>, window_params = [{pipeline_mode = #tpu.pipeline_mode<synchronous>, transform_indices = @transform_0, window_bounds = array<i64: 16, 128>}, {pipeline_mode = #tpu.pipeline_mode<synchronous>, transform_indices = @transform_1, window_bounds = array<i64: 1, 128>}, {pipeline_mode = #tpu.pipeline_mode<synchronous>, transform_indices = @transform_2, window_bounds = array<i64: 1, 128>}, {pipeline_mode = #tpu.pipeline_mode<synchronous>, transform_indices = @transform_3, window_bounds = array<i64: 2, 1, 8>}, {transform_indices = @transform_4, window_bounds = array<i64: 1, 128, 384>}, {transform_indices = @transform_5, window_bounds = array<i64: 1, 1, 384>}, {transform_indices = @transform_6, window_bounds = array<i64: 1, 128, 128>}, {transform_indices = @transform_7, window_bounds = array<i64: 1, 1, 128>}, {transform_indices = @transform_8, window_bounds = array<i64: 1, 128, 256>}, {transform_indices = @transform_9, window_bounds = array<i64: 1, 1, 256>}, {transform_indices = @transform_10, window_bounds = array<i64: 1, 256, 128>}, {transform_indices = @transform_11, window_bounds = array<i64: 1, 1, 128>}, {transform_indices = @transform_12, window_bounds = array<i64: 1, 1, 128>}, {transform_indices = @transform_13, window_bounds = array<i64: 1, 1, 128>}, {transform_indices = @transform_14, window_bounds = array<i64: 1, 1, 128>}, {transform_indices = @transform_15, window_bounds = array<i64: 1, 1, 128>}, {pipeline_mode = #tpu.pipeline_mode<synchronous>, transform_indices = @transform_16, window_bounds = array<i64: 16, 128>}, {pipeline_mode = #tpu.pipeline_mode<synchronous>, transform_indices = @transform_17, window_bounds = array<i64: 1, 128>}, {pipeline_mode = #tpu.pipeline_mode<synchronous>, transform_indices = @transform_18, window_bounds = array<i64: 1, 128>}]} {
    %c0_i32 = arith.constant 0 : i32
    %0 = arith.cmpi eq, %arg0, %c0_i32 : i32
    %1 = arith.extui %0 : i1 to i32
    %c0_i32_0 = arith.constant 0 : i32
    %2 = arith.cmpi ne, %1, %c0_i32_0 : i32
    scf.if %2 {
      %c0_71 = arith.constant 0 : index
      %c0_72 = arith.constant 0 : index
      %163 = vector.load %arg1[%c0_71, %c0_72] : memref<16x128xf32, #tpu.memory_space<vmem>>, vector<16x128xf32>
      %c0_73 = arith.constant 0 : index
      %c0_74 = arith.constant 0 : index
      %164 = vector.load %arg2[%c0_73, %c0_74] : memref<1x128xf32, #tpu.memory_space<vmem>>, vector<1x128xf32>
      %c0_75 = arith.constant 0 : index
      %c0_76 = arith.constant 0 : index
      %165 = vector.load %arg3[%c0_75, %c0_76] : memref<1x128xf32, #tpu.memory_space<vmem>>, vector<1x128xf32>
      %cst_77 = arith.constant dense<0.000000e+00> : vector<16xf32>
      %166 = vector.multi_reduction <add>, %163, %cst_77 [1] : vector<16x128xf32> to vector<16xf32>
      %167 = vector.shape_cast %166 : vector<16xf32> to vector<16x1xf32>
      %cst_78 = arith.constant 1.280000e+02 : f32
      %168 = vector.broadcast %cst_78 : f32 to vector<16x1xf32>
      %169 = arith.divf %167, %168 : vector<16x1xf32>
      %170 = vector.broadcast %169 : vector<16x1xf32> to vector<16x128xf32>
      %171 = arith.subf %163, %170 : vector<16x128xf32>
      %172 = arith.mulf %171, %171 : vector<16x128xf32>
      %cst_79 = arith.constant dense<0.000000e+00> : vector<16xf32>
      %173 = vector.multi_reduction <add>, %172, %cst_79 [1] : vector<16x128xf32> to vector<16xf32>
      %174 = vector.shape_cast %173 : vector<16xf32> to vector<16x1xf32>
      %cst_80 = arith.constant 1.280000e+02 : f32
      %175 = vector.broadcast %cst_80 : f32 to vector<16x1xf32>
      %176 = arith.divf %174, %175 : vector<16x1xf32>
      %cst_81 = arith.constant 9.99999996E-13 : f32
      %177 = vector.broadcast %cst_81 : f32 to vector<16x1xf32>
      %178 = arith.addf %176, %177 : vector<16x1xf32>
      %179 = math.rsqrt %178 : vector<16x1xf32>
      %180 = vector.broadcast %169 : vector<16x1xf32> to vector<16x128xf32>
      %181 = arith.subf %163, %180 : vector<16x128xf32>
      %182 = vector.broadcast %179 : vector<16x1xf32> to vector<16x128xf32>
      %183 = arith.mulf %181, %182 : vector<16x128xf32>
      %184 = vector.broadcast %164 : vector<1x128xf32> to vector<16x128xf32>
      %185 = arith.mulf %183, %184 : vector<16x128xf32>
      %186 = vector.broadcast %165 : vector<1x128xf32> to vector<16x128xf32>
      %187 = arith.addf %185, %186 : vector<16x128xf32>
      %c0_82 = arith.constant 0 : index
      %c0_83 = arith.constant 0 : index
      %188 = vector.load %arg20[%c0_82, %c0_83] : memref<16x128xf32, #tpu.memory_space<vmem>>, vector<16x128xf32>
      tpu.vector_store %arg20[%c0_82, %c0_83], %187 {strides = array<i32>} : memref<16x128xf32, #tpu.memory_space<vmem>>, vector<16x128xf32>,
    } else {
    }
    %c0 = arith.constant 0 : index
    %c0_1 = arith.constant 0 : index
    %3 = vector.load %arg20[%c0, %c0_1] : memref<16x128xf32, #tpu.memory_space<vmem>>, vector<16x128xf32>
    %4 = arith.truncf %3 : vector<16x128xf32> to vector<16x128xbf16>
    %c0_2 = arith.constant 0 : index
    %c0_3 = arith.constant 0 : index
    %c0_4 = arith.constant 0 : index
    %5 = vector.load %arg5[%c0_2, %c0_3, %c0_4] : memref<1x128x384xbf16, #tpu.memory_space<vmem>>, vector<1x128x384xbf16>
    %6 = vector.shape_cast %5 : vector<1x128x384xbf16> to vector<128x384xbf16>
    %cst = arith.constant dense<0.000000e+00> : vector<16x384xf32>
    %7 = tpu.matmul %4, %6, %cst {dimension_numbers = #tpu.dot_dimension_numbers<[1], [0], [0], [1], [0, 0, 1, 1], [], []>} : vector<16x128xbf16>, vector<128x384xbf16>, vector<16x384xf32> -> vector<16x384xf32>
    %c0_5 = arith.constant 0 : index
    %c0_6 = arith.constant 0 : index
    %c0_7 = arith.constant 0 : index
    %8 = vector.load %arg6[%c0_5, %c0_6, %c0_7] : memref<1x1x384xf32, #tpu.memory_space<vmem>>, vector<1x1x384xf32>
    %9 = vector.shape_cast %8 : vector<1x1x384xf32> to vector<1x384xf32>
    %10 = vector.broadcast %9 : vector<1x384xf32> to vector<16x384xf32>
    %11 = arith.addf %7, %10 : vector<16x384xf32>
    %c0_8 = arith.constant 0 : index
    %c0_9 = arith.constant 0 : index
    %c0_10 = arith.constant 0 : index
    %12 = vector.load %arg4[%c0_8, %c0_9, %c0_10] : memref<2x1x8xf32, #tpu.memory_space<vmem>>, vector<2x1x8xf32>
    %13 = vector.extract_strided_slice %11 {offsets = [0, 0], sizes = [16, 64], strides = [1, 1]} : vector<16x384xf32> to vector<16x64xf32>
    %14 = vector.shape_cast %13 : vector<16x64xf32> to vector<2x8x64xf32>
    %15 = arith.truncf %14 : vector<2x8x64xf32> to vector<2x8x64xbf16>
    %16 = vector.extract_strided_slice %11 {offsets = [0, 128], sizes = [16, 64], strides = [1, 1]} : vector<16x384xf32> to vector<16x64xf32>
    %17 = vector.shape_cast %16 : vector<16x64xf32> to vector<2x8x64xf32>
    %18 = arith.truncf %17 : vector<2x8x64xf32> to vector<2x8x64xbf16>
    %19 = vector.extract_strided_slice %11 {offsets = [0, 256], sizes = [16, 64], strides = [1, 1]} : vector<16x384xf32> to vector<16x64xf32>
    %20 = vector.shape_cast %19 : vector<16x64xf32> to vector<2x8x64xf32>
    %21 = arith.truncf %20 : vector<2x8x64xf32> to vector<2x8x64xbf16>
    "tpu.trace_start"() <{level = 10 : i32, message = "bqd,bkd->bqk"}> : () -> ()
    %cst_11 = arith.constant dense<0.000000e+00> : vector<2x8x8xf32>
    %22 = tpu.matmul %15, %18, %cst_11 {dimension_numbers = #tpu.dot_dimension_numbers<[2], [2], [1], [1], [0, 0, 0, 1, 1, 1], [0], [0]>} : vector<2x8x64xbf16>, vector<2x8x64xbf16>, vector<2x8x8xf32> -> vector<2x8x8xf32>
    "tpu.trace_stop"() : () -> ()
    %cst_12 = arith.constant 1.250000e-01 : f32
    %23 = vector.broadcast %cst_12 : f32 to vector<2x8x8xf32>
    %24 = arith.mulf %22, %23 : vector<2x8x8xf32>
    %25 = vector.broadcast %12 : vector<2x1x8xf32> to vector<2x8x8xf32>
    %26 = arith.addf %24, %25 : vector<2x8x8xf32>
    %cst_13 = arith.constant dense<0xFF800000> : vector<2x8xf32>
    %27 = vector.multi_reduction <maximumf>, %26, %cst_13 [2] : vector<2x8x8xf32> to vector<2x8xf32>
    %28 = vector.shape_cast %27 : vector<2x8xf32> to vector<2x8x1xf32>
    %29 = vector.broadcast %28 : vector<2x8x1xf32> to vector<2x8x8xf32>
    %30 = arith.subf %26, %29 : vector<2x8x8xf32>
    %31 = math.exp %30 : vector<2x8x8xf32>
    %cst_14 = arith.constant dense<0.000000e+00> : vector<2x8xf32>
    %32 = vector.multi_reduction <add>, %31, %cst_14 [2] : vector<2x8x8xf32> to vector<2x8xf32>
    %33 = vector.shape_cast %32 : vector<2x8xf32> to vector<2x8x1xf32>
    %34 = tpu.reciprocal %33 {approx = true} : vector<2x8x1xf32> -> vector<2x8x1xf32>
    %35 = vector.broadcast %34 : vector<2x8x1xf32> to vector<2x8x8xf32>
    %36 = arith.mulf %31, %35 : vector<2x8x8xf32>
    %37 = arith.truncf %36 : vector<2x8x8xf32> to vector<2x8x8xbf16>
    "tpu.trace_start"() <{level = 10 : i32, message = "bqk,bkd->bqd"}> : () -> ()
    %cst_15 = arith.constant dense<0.000000e+00> : vector<2x8x64xf32>
    %38 = tpu.matmul %37, %21, %cst_15 {dimension_numbers = #tpu.dot_dimension_numbers<[2], [1], [1], [2], [0, 0, 0, 1, 1, 2], [0], [0]>} : vector<2x8x8xbf16>, vector<2x8x64xbf16>, vector<2x8x64xf32> -> vector<2x8x64xf32>
    "tpu.trace_stop"() : () -> ()
    %39 = vector.shape_cast %38 : vector<2x8x64xf32> to vector<16x64xf32>
    %40 = vector.extract_strided_slice %11 {offsets = [0, 64], sizes = [16, 64], strides = [1, 1]} : vector<16x384xf32> to vector<16x64xf32>
    %41 = vector.shape_cast %40 : vector<16x64xf32> to vector<2x8x64xf32>
    %42 = arith.truncf %41 : vector<2x8x64xf32> to vector<2x8x64xbf16>
    %43 = vector.extract_strided_slice %11 {offsets = [0, 192], sizes = [16, 64], strides = [1, 1]} : vector<16x384xf32> to vector<16x64xf32>
    %44 = vector.shape_cast %43 : vector<16x64xf32> to vector<2x8x64xf32>
    %45 = arith.truncf %44 : vector<2x8x64xf32> to vector<2x8x64xbf16>
    %46 = vector.extract_strided_slice %11 {offsets = [0, 320], sizes = [16, 64], strides = [1, 1]} : vector<16x384xf32> to vector<16x64xf32>
    %47 = vector.shape_cast %46 : vector<16x64xf32> to vector<2x8x64xf32>
    %48 = arith.truncf %47 : vector<2x8x64xf32> to vector<2x8x64xbf16>
    "tpu.trace_start"() <{level = 10 : i32, message = "bqd,bkd->bqk"}> : () -> ()
    %cst_16 = arith.constant dense<0.000000e+00> : vector<2x8x8xf32>
    %49 = tpu.matmul %42, %45, %cst_16 {dimension_numbers = #tpu.dot_dimension_numbers<[2], [2], [1], [1], [0, 0, 0, 1, 1, 1], [0], [0]>} : vector<2x8x64xbf16>, vector<2x8x64xbf16>, vector<2x8x8xf32> -> vector<2x8x8xf32>
    "tpu.trace_stop"() : () -> ()
    %cst_17 = arith.constant 1.250000e-01 : f32
    %50 = vector.broadcast %cst_17 : f32 to vector<2x8x8xf32>
    %51 = arith.mulf %49, %50 : vector<2x8x8xf32>
    %52 = vector.broadcast %12 : vector<2x1x8xf32> to vector<2x8x8xf32>
    %53 = arith.addf %51, %52 : vector<2x8x8xf32>
    %cst_18 = arith.constant dense<0xFF800000> : vector<2x8xf32>
    %54 = vector.multi_reduction <maximumf>, %53, %cst_18 [2] : vector<2x8x8xf32> to vector<2x8xf32>
    %55 = vector.shape_cast %54 : vector<2x8xf32> to vector<2x8x1xf32>
    %56 = vector.broadcast %55 : vector<2x8x1xf32> to vector<2x8x8xf32>
    %57 = arith.subf %53, %56 : vector<2x8x8xf32>
    %58 = math.exp %57 : vector<2x8x8xf32>
    %cst_19 = arith.constant dense<0.000000e+00> : vector<2x8xf32>
    %59 = vector.multi_reduction <add>, %58, %cst_19 [2] : vector<2x8x8xf32> to vector<2x8xf32>
    %60 = vector.shape_cast %59 : vector<2x8xf32> to vector<2x8x1xf32>
    %61 = tpu.reciprocal %60 {approx = true} : vector<2x8x1xf32> -> vector<2x8x1xf32>
    %62 = vector.broadcast %61 : vector<2x8x1xf32> to vector<2x8x8xf32>
    %63 = arith.mulf %58, %62 : vector<2x8x8xf32>
    %64 = arith.truncf %63 : vector<2x8x8xf32> to vector<2x8x8xbf16>
    "tpu.trace_start"() <{level = 10 : i32, message = "bqk,bkd->bqd"}> : () -> ()
    %cst_20 = arith.constant dense<0.000000e+00> : vector<2x8x64xf32>
    %65 = tpu.matmul %64, %48, %cst_20 {dimension_numbers = #tpu.dot_dimension_numbers<[2], [1], [1], [2], [0, 0, 0, 1, 1, 2], [0], [0]>} : vector<2x8x8xbf16>, vector<2x8x64xbf16>, vector<2x8x64xf32> -> vector<2x8x64xf32>
    "tpu.trace_stop"() : () -> ()
    %66 = vector.shape_cast %65 : vector<2x8x64xf32> to vector<16x64xf32>
    %67 = tpu.concatenate %39, %66 in 1 : vector<16x64xf32>, vector<16x64xf32> -> vector<16x128xf32>
    %68 = arith.truncf %67 : vector<16x128xf32> to vector<16x128xbf16>
    %c0_21 = arith.constant 0 : index
    %c0_22 = arith.constant 0 : index
    %c0_23 = arith.constant 0 : index
    %69 = vector.load %arg7[%c0_21, %c0_22, %c0_23] : memref<1x128x128xbf16, #tpu.memory_space<vmem>>, vector<1x128x128xbf16>
    %70 = vector.shape_cast %69 : vector<1x128x128xbf16> to vector<128x128xbf16>
    %cst_24 = arith.constant dense<0.000000e+00> : vector<16x128xf32>
    %71 = tpu.matmul %68, %70, %cst_24 {dimension_numbers = #tpu.dot_dimension_numbers<[1], [0], [0], [1], [0, 0, 1, 1], [], []>} : vector<16x128xbf16>, vector<128x128xbf16>, vector<16x128xf32> -> vector<16x128xf32>
    %c0_25 = arith.constant 0 : index
    %c0_26 = arith.constant 0 : index
    %c0_27 = arith.constant 0 : index
    %72 = vector.load %arg8[%c0_25, %c0_26, %c0_27] : memref<1x1x128xf32, #tpu.memory_space<vmem>>, vector<1x1x128xf32>
    %73 = vector.shape_cast %72 : vector<1x1x128xf32> to vector<1x128xf32>
    %74 = vector.broadcast %73 : vector<1x128xf32> to vector<16x128xf32>
    %75 = arith.addf %71, %74 : vector<16x128xf32>
    %76 = arith.addf %75, %3 : vector<16x128xf32>
    %c0_28 = arith.constant 0 : index
    %c0_29 = arith.constant 0 : index
    %c0_30 = arith.constant 0 : index
    %77 = vector.load %arg13[%c0_28, %c0_29, %c0_30] : memref<1x1x128xf32, #tpu.memory_space<vmem>>, vector<1x1x128xf32>
    %78 = vector.shape_cast %77 : vector<1x1x128xf32> to vector<1x128xf32>
    %c0_31 = arith.constant 0 : index
    %c0_32 = arith.constant 0 : index
    %c0_33 = arith.constant 0 : index
    %79 = vector.load %arg14[%c0_31, %c0_32, %c0_33] : memref<1x1x128xf32, #tpu.memory_space<vmem>>, vector<1x1x128xf32>
    %80 = vector.shape_cast %79 : vector<1x1x128xf32> to vector<1x128xf32>
    %cst_34 = arith.constant dense<0.000000e+00> : vector<16xf32>
    %81 = vector.multi_reduction <add>, %76, %cst_34 [1] : vector<16x128xf32> to vector<16xf32>
    %82 = vector.shape_cast %81 : vector<16xf32> to vector<16x1xf32>
    %cst_35 = arith.constant 1.280000e+02 : f32
    %83 = vector.broadcast %cst_35 : f32 to vector<16x1xf32>
    %84 = arith.divf %82, %83 : vector<16x1xf32>
    %85 = vector.broadcast %84 : vector<16x1xf32> to vector<16x128xf32>
    %86 = arith.subf %76, %85 : vector<16x128xf32>
    %87 = arith.mulf %86, %86 : vector<16x128xf32>
    %cst_36 = arith.constant dense<0.000000e+00> : vector<16xf32>
    %88 = vector.multi_reduction <add>, %87, %cst_36 [1] : vector<16x128xf32> to vector<16xf32>
    %89 = vector.shape_cast %88 : vector<16xf32> to vector<16x1xf32>
    %cst_37 = arith.constant 1.280000e+02 : f32
    %90 = vector.broadcast %cst_37 : f32 to vector<16x1xf32>
    %91 = arith.divf %89, %90 : vector<16x1xf32>
    %cst_38 = arith.constant 9.99999996E-13 : f32
    %92 = vector.broadcast %cst_38 : f32 to vector<16x1xf32>
    %93 = arith.addf %91, %92 : vector<16x1xf32>
    %94 = math.rsqrt %93 : vector<16x1xf32>
    %95 = vector.broadcast %84 : vector<16x1xf32> to vector<16x128xf32>
    %96 = arith.subf %76, %95 : vector<16x128xf32>
    %97 = vector.broadcast %94 : vector<16x1xf32> to vector<16x128xf32>
    %98 = arith.mulf %96, %97 : vector<16x128xf32>
    %99 = vector.broadcast %78 : vector<1x128xf32> to vector<16x128xf32>
    %100 = arith.mulf %98, %99 : vector<16x128xf32>
    %101 = vector.broadcast %80 : vector<1x128xf32> to vector<16x128xf32>
    %102 = arith.addf %100, %101 : vector<16x128xf32>
    %103 = arith.truncf %102 : vector<16x128xf32> to vector<16x128xbf16>
    %c0_39 = arith.constant 0 : index
    %c0_40 = arith.constant 0 : index
    %c0_41 = arith.constant 0 : index
    %104 = vector.load %arg9[%c0_39, %c0_40, %c0_41] : memref<1x128x256xbf16, #tpu.memory_space<vmem>>, vector<1x128x256xbf16>
    %105 = vector.shape_cast %104 : vector<1x128x256xbf16> to vector<128x256xbf16>
    %cst_42 = arith.constant dense<0.000000e+00> : vector<16x256xf32>
    %106 = tpu.matmul %103, %105, %cst_42 {dimension_numbers = #tpu.dot_dimension_numbers<[1], [0], [0], [1], [0, 0, 1, 1], [], []>} : vector<16x128xbf16>, vector<128x256xbf16>, vector<16x256xf32> -> vector<16x256xf32>
    %c0_43 = arith.constant 0 : index
    %c0_44 = arith.constant 0 : index
    %c0_45 = arith.constant 0 : index
    %107 = vector.load %arg10[%c0_43, %c0_44, %c0_45] : memref<1x1x256xf32, #tpu.memory_space<vmem>>, vector<1x1x256xf32>
    %108 = vector.shape_cast %107 : vector<1x1x256xf32> to vector<1x256xf32>
    %109 = vector.broadcast %108 : vector<1x256xf32> to vector<16x256xf32>
    %110 = arith.addf %106, %109 : vector<16x256xf32>
    %cst_46 = arith.constant 5.000000e-01 : f32
    %111 = vector.broadcast %cst_46 : f32 to vector<16x256xf32>
    %112 = arith.mulf %111, %110 : vector<16x256xf32>
    %cst_47 = arith.constant 4.471500e-02 : f32
    %113 = vector.broadcast %cst_47 : f32 to vector<16x256xf32>
    %114 = arith.mulf %113, %110 : vector<16x256xf32>
    %115 = arith.mulf %114, %110 : vector<16x256xf32>
    %116 = arith.mulf %115, %110 : vector<16x256xf32>
    %117 = arith.addf %110, %116 : vector<16x256xf32>
    %cst_48 = arith.constant 0.797884583 : f32
    %118 = vector.broadcast %cst_48 : f32 to vector<16x256xf32>
    %119 = arith.mulf %118, %117 : vector<16x256xf32>
    %120 = math.tanh %119 : vector<16x256xf32>
    %cst_49 = arith.constant 1.000000e+00 : f32
    %121 = vector.broadcast %cst_49 : f32 to vector<16x256xf32>
    %122 = arith.addf %121, %120 : vector<16x256xf32>
    %123 = arith.mulf %112, %122 : vector<16x256xf32>
    %124 = arith.truncf %123 : vector<16x256xf32> to vector<16x256xbf16>
    %c0_50 = arith.constant 0 : index
    %c0_51 = arith.constant 0 : index
    %c0_52 = arith.constant 0 : index
    %125 = vector.load %arg11[%c0_50, %c0_51, %c0_52] : memref<1x256x128xbf16, #tpu.memory_space<vmem>>, vector<1x256x128xbf16>
    %126 = vector.shape_cast %125 : vector<1x256x128xbf16> to vector<256x128xbf16>
    %cst_53 = arith.constant dense<0.000000e+00> : vector<16x128xf32>
    %127 = tpu.matmul %124, %126, %cst_53 {dimension_numbers = #tpu.dot_dimension_numbers<[1], [0], [0], [1], [0, 0, 1, 1], [], []>} : vector<16x256xbf16>, vector<256x128xbf16>, vector<16x128xf32> -> vector<16x128xf32>
    %c0_54 = arith.constant 0 : index
    %c0_55 = arith.constant 0 : index
    %c0_56 = arith.constant 0 : index
    %128 = vector.load %arg12[%c0_54, %c0_55, %c0_56] : memref<1x1x128xf32, #tpu.memory_space<vmem>>, vector<1x1x128xf32>
    %129 = vector.shape_cast %128 : vector<1x1x128xf32> to vector<1x128xf32>
    %130 = vector.broadcast %129 : vector<1x128xf32> to vector<16x128xf32>
    %131 = arith.addf %127, %130 : vector<16x128xf32>
    %132 = arith.addf %131, %102 : vector<16x128xf32>
    %c0_57 = arith.constant 0 : index
    %c0_58 = arith.constant 0 : index
    %c0_59 = arith.constant 0 : index
    %133 = vector.load %arg15[%c0_57, %c0_58, %c0_59] : memref<1x1x128xf32, #tpu.memory_space<vmem>>, vector<1x1x128xf32>
    %134 = vector.shape_cast %133 : vector<1x1x128xf32> to vector<1x128xf32>
    %c0_60 = arith.constant 0 : index
    %c0_61 = arith.constant 0 : index
    %c0_62 = arith.constant 0 : index
    %135 = vector.load %arg16[%c0_60, %c0_61, %c0_62] : memref<1x1x128xf32, #tpu.memory_space<vmem>>, vector<1x1x128xf32>
    %136 = vector.shape_cast %135 : vector<1x1x128xf32> to vector<1x128xf32>
    %cst_63 = arith.constant dense<0.000000e+00> : vector<16xf32>
    %137 = vector.multi_reduction <add>, %132, %cst_63 [1] : vector<16x128xf32> to vector<16xf32>
    %138 = vector.shape_cast %137 : vector<16xf32> to vector<16x1xf32>
    %cst_64 = arith.constant 1.280000e+02 : f32
    %139 = vector.broadcast %cst_64 : f32 to vector<16x1xf32>
    %140 = arith.divf %138, %139 : vector<16x1xf32>
    %141 = vector.broadcast %140 : vector<16x1xf32> to vector<16x128xf32>
    %142 = arith.subf %132, %141 : vector<16x128xf32>
    %143 = arith.mulf %142, %142 : vector<16x128xf32>
    %cst_65 = arith.constant dense<0.000000e+00> : vector<16xf32>
    %144 = vector.multi_reduction <add>, %143, %cst_65 [1] : vector<16x128xf32> to vector<16xf32>
    %145 = vector.shape_cast %144 : vector<16xf32> to vector<16x1xf32>
    %cst_66 = arith.constant 1.280000e+02 : f32
    %146 = vector.broadcast %cst_66 : f32 to vector<16x1xf32>
    %147 = arith.divf %145, %146 : vector<16x1xf32>
    %cst_67 = arith.constant 9.99999996E-13 : f32
    %148 = vector.broadcast %cst_67 : f32 to vector<16x1xf32>
    %149 = arith.addf %147, %148 : vector<16x1xf32>
    %150 = math.rsqrt %149 : vector<16x1xf32>
    %151 = vector.broadcast %140 : vector<16x1xf32> to vector<16x128xf32>
    %152 = arith.subf %132, %151 : vector<16x128xf32>
    %153 = vector.broadcast %150 : vector<16x1xf32> to vector<16x128xf32>
    %154 = arith.mulf %152, %153 : vector<16x128xf32>
    %155 = vector.broadcast %134 : vector<1x128xf32> to vector<16x128xf32>
    %156 = arith.mulf %154, %155 : vector<16x128xf32>
    %157 = vector.broadcast %136 : vector<1x128xf32> to vector<16x128xf32>
    %158 = arith.addf %156, %157 : vector<16x128xf32>
    %c0_68 = arith.constant 0 : index
    %c0_69 = arith.constant 0 : index
    %159 = vector.load %arg20[%c0_68, %c0_69] : memref<16x128xf32, #tpu.memory_space<vmem>>, vector<16x128xf32>
    tpu.vector_store %arg20[%c0_68, %c0_69], %158 {strides = array<i32>} : memref<16x128xf32, #tpu.memory_space<vmem>>, vector<16x128xf32>,
    %c1_i32 = arith.constant 1 : i32
    %160 = arith.cmpi eq, %arg0, %c1_i32 : i32
    %161 = arith.extui %160 : i1 to i32
    %c0_i32_70 = arith.constant 0 : i32
    %162 = arith.cmpi ne, %161, %c0_i32_70 : i32
    scf.if %162 {
      %c0_71 = arith.constant 0 : index
      %c0_72 = arith.constant 0 : index
      %163 = vector.load %arg17[%c0_71, %c0_72] : memref<16x128xf32, #tpu.memory_space<vmem>>, vector<16x128xf32>
      tpu.vector_store %arg17[%c0_71, %c0_72], %158 {strides = array<i32>} : memref<16x128xf32, #tpu.memory_space<vmem>>, vector<16x128xf32>,
      %164 = vector.extract_strided_slice %158 {offsets = [0, 0], sizes = [1, 128], strides = [1, 1]} : vector<16x128xf32> to vector<1x128xf32>
      %c0_73 = arith.constant 0 : index
      %c0_74 = arith.constant 0 : index
      %165 = vector.load %arg18[%c0_73, %c0_74] : memref<1x128xf32, #tpu.memory_space<vmem>>, vector<1x128xf32>
      tpu.vector_store %arg18[%c0_73, %c0_74], %164 {strides = array<i32>} : memref<1x128xf32, #tpu.memory_space<vmem>>, vector<1x128xf32>,
      %cst_75 = arith.constant dense<0.000000e+00> : vector<128xf32>
      %166 = vector.multi_reduction <add>, %158, %cst_75 [0] : vector<16x128xf32> to vector<128xf32>
      %167 = vector.shape_cast %166 : vector<128xf32> to vector<1x128xf32>
      %cst_76 = arith.constant 1.600000e+01 : f32
      %168 = vector.broadcast %cst_76 : f32 to vector<1x128xf32>
      %169 = arith.divf %167, %168 : vector<1x128xf32>
      %c0_77 = arith.constant 0 : index
      %c0_78 = arith.constant 0 : index
      %170 = vector.load %arg19[%c0_77, %c0_78] : memref<1x128xf32, #tpu.memory_space<vmem>>, vector<1x128xf32>
      tpu.vector_store %arg19[%c0_77, %c0_78], %169 {strides = array<i32>} : memref<1x128xf32, #tpu.memory_space<vmem>>, vector<1x128xf32>,
    } else {
    }
    return
  }
  func.func @transform_0(%arg0: i32) -> (i32, i32) {
    %c0_i32 = arith.constant 0 : i32
    %c0_i32_0 = arith.constant 0 : i32
    %c0_i32_1 = arith.constant 0 : i32
    return %c0_i32, %c0_i32_0 : i32, i32
  }
  func.func @transform_1(%arg0: i32) -> (i32, i32) {
    %c0_i32 = arith.constant 0 : i32
    %c0_i32_0 = arith.constant 0 : i32
    %c0_i32_1 = arith.constant 0 : i32
    return %c0_i32, %c0_i32_0 : i32, i32
  }
  func.func @transform_2(%arg0: i32) -> (i32, i32) {
    %c0_i32 = arith.constant 0 : i32
    %c0_i32_0 = arith.constant 0 : i32
    %c0_i32_1 = arith.constant 0 : i32
    return %c0_i32, %c0_i32_0 : i32, i32
  }
  func.func @transform_3(%arg0: i32) -> (i32, i32, i32) {
    %c0_i32 = arith.constant 0 : i32
    %c0_i32_0 = arith.constant 0 : i32
    %c0_i32_1 = arith.constant 0 : i32
    %c0_i32_2 = arith.constant 0 : i32
    return %c0_i32, %c0_i32_0, %c0_i32_1 : i32, i32, i32
  }
  func.func @transform_4(%arg0: i32) -> (i32, i32, i32) {
    %c0_i32 = arith.constant 0 : i32
    %c0_i32_0 = arith.constant 0 : i32
    %c0_i32_1 = arith.constant 0 : i32
    return %arg0, %c0_i32, %c0_i32_0 : i32, i32, i32
  }
  func.func @transform_5(%arg0: i32) -> (i32, i32, i32) {
    %c0_i32 = arith.constant 0 : i32
    %c0_i32_0 = arith.constant 0 : i32
    %c0_i32_1 = arith.constant 0 : i32
    return %arg0, %c0_i32, %c0_i32_0 : i32, i32, i32
  }
  func.func @transform_6(%arg0: i32) -> (i32, i32, i32) {
    %c0_i32 = arith.constant 0 : i32
    %c0_i32_0 = arith.constant 0 : i32
    %c0_i32_1 = arith.constant 0 : i32
    return %arg0, %c0_i32, %c0_i32_0 : i32, i32, i32
  }
  func.func @transform_7(%arg0: i32) -> (i32, i32, i32) {
    %c0_i32 = arith.constant 0 : i32
    %c0_i32_0 = arith.constant 0 : i32
    %c0_i32_1 = arith.constant 0 : i32
    return %arg0, %c0_i32, %c0_i32_0 : i32, i32, i32
  }
  func.func @transform_8(%arg0: i32) -> (i32, i32, i32) {
    %c0_i32 = arith.constant 0 : i32
    %c0_i32_0 = arith.constant 0 : i32
    %c0_i32_1 = arith.constant 0 : i32
    return %arg0, %c0_i32, %c0_i32_0 : i32, i32, i32
  }
  func.func @transform_9(%arg0: i32) -> (i32, i32, i32) {
    %c0_i32 = arith.constant 0 : i32
    %c0_i32_0 = arith.constant 0 : i32
    %c0_i32_1 = arith.constant 0 : i32
    return %arg0, %c0_i32, %c0_i32_0 : i32, i32, i32
  }
  func.func @transform_10(%arg0: i32) -> (i32, i32, i32) {
    %c0_i32 = arith.constant 0 : i32
    %c0_i32_0 = arith.constant 0 : i32
    %c0_i32_1 = arith.constant 0 : i32
    return %arg0, %c0_i32, %c0_i32_0 : i32, i32, i32
  }
  func.func @transform_11(%arg0: i32) -> (i32, i32, i32) {
    %c0_i32 = arith.constant 0 : i32
    %c0_i32_0 = arith.constant 0 : i32
    %c0_i32_1 = arith.constant 0 : i32
    return %arg0, %c0_i32, %c0_i32_0 : i32, i32, i32
  }
  func.func @transform_12(%arg0: i32) -> (i32, i32, i32) {
    %c0_i32 = arith.constant 0 : i32
    %c0_i32_0 = arith.constant 0 : i32
    %c0_i32_1 = arith.constant 0 : i32
    return %arg0, %c0_i32, %c0_i32_0 : i32, i32, i32
  }
  func.func @transform_13(%arg0: i32) -> (i32, i32, i32) {
    %c0_i32 = arith.constant 0 : i32
    %c0_i32_0 = arith.constant 0 : i32
    %c0_i32_1 = arith.constant 0 : i32
    return %arg0, %c0_i32, %c0_i32_0 : i32, i32, i32
  }
  func.func @transform_14(%arg0: i32) -> (i32, i32, i32) {
    %c0_i32 = arith.constant 0 : i32
    %c0_i32_0 = arith.constant 0 : i32
    %c0_i32_1 = arith.constant 0 : i32
    return %arg0, %c0_i32, %c0_i32_0 : i32, i32, i32
  }
  func.func @transform_15(%arg0: i32) -> (i32, i32, i32) {
    %c0_i32 = arith.constant 0 : i32
    %c0_i32_0 = arith.constant 0 : i32
    %c0_i32_1 = arith.constant 0 : i32
    return %arg0, %c0_i32, %c0_i32_0 : i32, i32, i32
  }
  func.func @transform_16(%arg0: i32) -> (i32, i32) {
    %c0_i32 = arith.constant 0 : i32
    %c0_i32_0 = arith.constant 0 : i32
    %c0_i32_1 = arith.constant 0 : i32
    return %c0_i32, %c0_i32_0 : i32, i32
  }
  func.func @transform_17(%arg0: i32) -> (i32, i32) {
    %c0_i32 = arith.constant 0 : i32
    %c0_i32_0 = arith.constant 0 : i32
    %c0_i32_1 = arith.constant 0 : i32
    return %c0_i32, %c0_i32_0 : i32, i32
  }
  func.func @transform_18(%arg0: i32) -> (i32, i32) {
    %c0_i32 = arith.constant 0 : i32
    %c0_i32_0 = arith.constant 0 : i32
    %c0_i32_1 = arith.constant 0 : i32
    return %c0_i32, %c0_i32_0 : i32, i32
  }
}

</mosaic_0001>

<llo_original>
// kernel: tpu_custom_call.1
$region0: #{tpu_custom_call.1}
  #allocation0 [shape = 'u32[]', space=smem, size = 0x4, offset = 0x4, fixed_abs, tag = 'smem constant byte address 0x4 - core index']
  #allocation1 [shape = 'u32[144,128]{1,0:T(1,128)}', space=vmem, size = 0x12000, scoped, tag = 'internal scratch']
  #allocation2 [shape = 'f32[16,128]{1,0:T(8,128)}', space=vmem, size = 0x2000, scoped, tag = 'scratch operand']
  %s0 = inlined_call_operand.hbm [shape: f32[16,128], index: 0, kind: input, shape index: {}]
  %s1 = inlined_call_operand.hbm [shape: f32[1,128], index: 1, kind: input, shape index: {}]
  %s2 = inlined_call_operand.hbm [shape: f32[1,128], index: 2, kind: input, shape index: {}]
  %s3 = inlined_call_operand.hbm [shape: f32[2,1,8], index: 3, kind: input, shape index: {}]
  %s4 = inlined_call_operand.hbm [shape: bf16[3,128,384], index: 4, kind: input, shape index: {}]
  %s5 = inlined_call_operand.vmem [shape: f32[3,1,384], index: 5, kind: input, shape index: {}]
  %s6 = inlined_call_operand.hbm [shape: bf16[3,128,128], index: 6, kind: input, shape index: {}]
  %s7 = inlined_call_operand.vmem [shape: f32[3,1,128], index: 7, kind: input, shape index: {}]
  %s8 = inlined_call_operand.hbm [shape: bf16[3,128,256], index: 8, kind: input, shape index: {}]
  %s9 = inlined_call_operand.vmem [shape: f32[3,1,256], index: 9, kind: input, shape index: {}]
  %s10 = inlined_call_operand.hbm [shape: bf16[3,256,128], index: 10, kind: input, shape index: {}]
  %s11 = inlined_call_operand.vmem [shape: f32[3,1,128], index: 11, kind: input, shape index: {}]
  %s12 = inlined_call_operand.vmem [shape: f32[3,1,128], index: 12, kind: input, shape index: {}]
  %s13 = inlined_call_operand.vmem [shape: f32[3,1,128], index: 13, kind: input, shape index: {}]
  %s14 = inlined_call_operand.vmem [shape: f32[3,1,128], index: 14, kind: input, shape index: {}]
  %s15 = inlined_call_operand.vmem [shape: f32[3,1,128], index: 15, kind: input, shape index: {}]
  %s16 = inlined_call_operand.hbm [shape: f32[16,128], index: 16, kind: output, shape index: {0}]
  %s17 = inlined_call_operand.hbm [shape: f32[1,128], index: 17, kind: output, shape index: {1}]
  %s18 = inlined_call_operand.hbm [shape: f32[1,128], index: 18, kind: output, shape index: {2}]
  %19 = xla_tuple %s16, %s17, %s18
  %s20 = sld [smem:[#allocation0]]
  $region153: #{tpu_custom_call.1} parent=0
    _
  %s22 = ssub.s32 1, %s20
  %s23 = scalar_select 0, %s22, %s20
  $region1: #{tpu_custom_call.1} parent=0
    #allocation3 [shape = 'u8[8192]{0}', space=vmem, size = 0x2000, scoped, tag = 'input window, operand 0, single buffered']
    #allocation4 [shape = 's32[2]{0}', space=sflag, size = 0x8, scoped, tag = 'scoped memory for tpu_custom_call.1']
    #allocation5 [shape = 's32[2]{0}', space=sflag, size = 0x8, scoped, tag = 'scoped memory for tpu_custom_call.1']
    #allocation6 [shape = 'u8[512]{0}', space=vmem, size = 0x400, scoped, tag = 'input window, operand 1, single buffered']
    #allocation7 [shape = 's32[1]{0}', space=sflag, size = 0x4, scoped, tag = 'scoped memory for tpu_custom_call.1']
    #allocation8 [shape = 'u8[512]{0}', space=vmem, size = 0x400, scoped, tag = 'input window, operand 2, single buffered']
    #allocation9 [shape = 'u8[1024]{0}', space=vmem, size = 0x400, scoped, tag = 'input window, operand 3, single buffered']
    #allocation10 [shape = 's32[1]{0}', space=sflag, size = 0x4, scoped, tag = 'scoped memory for tpu_custom_call.1']
    #allocation11 [shape = 'u8[196608]{0}', space=vmem, size = 0x30000, scoped, tag = 'input window, operand 4']
    #allocation12 [shape = 'u8[65536]{0}', space=vmem, size = 0x10000, scoped, tag = 'input window, operand 6']
    #allocation13 [shape = 'u8[131072]{0}', space=vmem, size = 0x20000, scoped, tag = 'input window, operand 8']
    #allocation14 [shape = 'u8[131072]{0}', space=vmem, size = 0x20000, scoped, tag = 'input window, operand 10']
    #allocation15 [shape = 'u8[8192]{0}', space=vmem, size = 0x2000, scoped, tag = 'output window, operand 0, single buffered']
    #allocation16 [shape = 'u8[512]{0}', space=vmem, size = 0x400, scoped, tag = 'output window, operand 1, single buffered']
    #allocation17 [shape = 's32[1]{0}', space=sflag, size = 0x4, scoped, tag = 'scoped memory for tpu_custom_call.1']
    #allocation18 [shape = 'u8[512]{0}', space=vmem, size = 0x400, scoped, tag = 'output window, operand 2, single buffered']
    %24 = vsyncpa [#allocation4], 0
    %25 = vsyncpa [#allocation7], 0
    %26 = vsyncpa [#allocation10], 0
    %27 = vsyncpa [#allocation5], 0
    %28 = vsyncpa [#allocation17], 0
    loop: start=0, step=1, limit=5
    $region2: #{tpu_custom_call.1} parent=1 // loop_pre_header
      _
    $region3: #{tpu_custom_call.1} parent=1 // loop_header
      %s30 = sphi 0, %s34
      %p31 = scmp.ge.s32.totalorder %s30, 5
      %s38 = sphi 0, %s38
      %s40 = sphi 0, %s38
      %s41 = sphi 0, %s40
      %s55 = sphi 0, %s41
      %s59 = sphi 0, %s59
      %s61 = sphi 0, %s59
      %s62 = sphi 0, %s61
      %s76 = sphi 0, %s62
      %s80 = sphi 0, %s80
      %s82 = sphi 0, %s80
      %s83 = sphi 0, %s82
      %s97 = sphi 0, %s83
      %s101 = sphi 0, %s101
      %s103 = sphi 0, %s101
      %s104 = sphi 0, %s103
      %s118 = sphi 0, %s104
      %s124 = sphi 0, %s126
      %s127 = sphi 0, %s124
      %s128 = sphi 0, %s127
      %s144 = sphi 0, %s128
      %s150 = sphi 0, %s152
      %s153 = sphi 0, %s150
      %s154 = sphi 0, %s153
      %s170 = sphi 0, %s154
      %s176 = sphi 0, %s178
      %s179 = sphi 0, %s176
      %s180 = sphi 0, %s179
      %s196 = sphi 0, %s180
      %s202 = sphi 0, %s204
      %s205 = sphi 0, %s202
      %s206 = sphi 0, %s205
      %s222 = sphi 0, %s206
      %s228 = sphi 0, %s230
      %s231 = sphi 0, %s228
      %s232 = sphi 0, %s231
      %s248 = sphi 0, %s232
      %s254 = sphi 0, %s256
      %s257 = sphi 0, %s254
      %s258 = sphi 0, %s257
      %s274 = sphi 0, %s258
      %s280 = sphi 0, %s282
      %s283 = sphi 0, %s280
      %s284 = sphi 0, %s283
      %s300 = sphi 0, %s284
      %s306 = sphi 0, %s308
      %s309 = sphi 0, %s306
      %s310 = sphi 0, %s309
      %s326 = sphi 0, %s310
      %s332 = sphi 0, %s334
      %s335 = sphi 0, %s332
      %s336 = sphi 0, %s335
      %s352 = sphi 0, %s336
      %s358 = sphi 0, %s360
      %s361 = sphi 0, %s358
      %s362 = sphi 0, %s361
      %s378 = sphi 0, %s362
      %s384 = sphi 0, %s386
      %s387 = sphi 0, %s384
      %s388 = sphi 0, %s387
      %s404 = sphi 0, %s388
      %s410 = sphi 0, %s412
      %s413 = sphi 0, %s410
      %s414 = sphi 0, %s413
      %s430 = sphi 0, %s414
      %s434 = sphi 0, %s434
      %s436 = sphi 0, %s434
      %s437 = sphi 0, %s436
      %s451 = sphi 0, %s437
      %s455 = sphi 0, %s455
      %s457 = sphi 0, %s455
      %s458 = sphi 0, %s457
      %s472 = sphi 0, %s458
      %s476 = sphi 0, %s476
      %s478 = sphi 0, %s476
      %s479 = sphi 0, %s478
      %s493 = sphi 0, %s479
    $region4: #{tpu_custom_call.1} parent=1 // loop_header_branch
      %33 = sbr.rel (%p31) target = $region8
    $region5: #{tpu_custom_call.1} parent=1 // loop_body
      %s35 = ssub.s32 %s30, 1
      %s36 = ssub.s32 %s30, 2
      %s37 = sadd.s32 %s30, 1
      %s39 = sadd.s32 %s38, 1
      %p42 = scmp.eq.s32.totalorder %s30, 2
      %p43 = scmp.ne.s32.totalorder %s38, %s40
      %p44 = scmp.eq.s32.totalorder %s30, 0
      %p45 = por %p43, %p44
      %p46 = scmp.ne.s32.totalorder %s38, %s40
      %p47 = scmp.eq.s32.totalorder %s35, 2
      %p48 = por %p46, %p47
      %p49 = scmp.ne.s32.totalorder %s40, %s41
      %p50 = scmp.eq.s32.totalorder %s35, 0
      %p51 = por %p49, %p50
      %p52 = scmp.ne.s32.totalorder %s40, %s41
      %p53 = scmp.eq.s32.totalorder %s36, 2
      %p54 = por %p52, %p53
      %p56 = scmp.ne.s32.totalorder %s41, %s55
      %p57 = scmp.eq.s32.totalorder %s36, 0
      %p58 = por %p56, %p57
      %s60 = sadd.s32 %s59, 1
      %p63 = scmp.eq.s32.totalorder %s30, 2
      %p64 = scmp.ne.s32.totalorder %s59, %s61
      %p65 = scmp.eq.s32.totalorder %s30, 0
      %p66 = por %p64, %p65
      %p67 = scmp.ne.s32.totalorder %s59, %s61
      %p68 = scmp.eq.s32.totalorder %s35, 2
      %p69 = por %p67, %p68
      %p70 = scmp.ne.s32.totalorder %s61, %s62
      %p71 = scmp.eq.s32.totalorder %s35, 0
      %p72 = por %p70, %p71
      %p73 = scmp.ne.s32.totalorder %s61, %s62
      %p74 = scmp.eq.s32.totalorder %s36, 2
      %p75 = por %p73, %p74
      %p77 = scmp.ne.s32.totalorder %s62, %s76
      %p78 = scmp.eq.s32.totalorder %s36, 0
      %p79 = por %p77, %p78
      %s81 = sadd.s32 %s80, 1
      %p84 = scmp.eq.s32.totalorder %s30, 2
      %p85 = scmp.ne.s32.totalorder %s80, %s82
      %p86 = scmp.eq.s32.totalorder %s30, 0
      %p87 = por %p85, %p86
      %p88 = scmp.ne.s32.totalorder %s80, %s82
      %p89 = scmp.eq.s32.totalorder %s35, 2
      %p90 = por %p88, %p89
      %p91 = scmp.ne.s32.totalorder %s82, %s83
      %p92 = scmp.eq.s32.totalorder %s35, 0
      %p93 = por %p91, %p92
      %p94 = scmp.ne.s32.totalorder %s82, %s83
      %p95 = scmp.eq.s32.totalorder %s36, 2
      %p96 = por %p94, %p95
      %p98 = scmp.ne.s32.totalorder %s83, %s97
      %p99 = scmp.eq.s32.totalorder %s36, 0
      %p100 = por %p98, %p99
      %s102 = sadd.s32 %s101, 1
      %p105 = scmp.eq.s32.totalorder %s30, 2
      %p106 = scmp.ne.s32.totalorder %s101, %s103
      %p107 = scmp.eq.s32.totalorder %s30, 0
      %p108 = por %p106, %p107
      %p109 = scmp.ne.s32.totalorder %s101, %s103
      %p110 = scmp.eq.s32.totalorder %s35, 2
      %p111 = por %p109, %p110
      %p112 = scmp.ne.s32.totalorder %s103, %s104
      %p113 = scmp.eq.s32.totalorder %s35, 0
      %p114 = por %p112, %p113
      %p115 = scmp.ne.s32.totalorder %s103, %s104
      %p116 = scmp.eq.s32.totalorder %s36, 2
      %p117 = por %p115, %p116
      %p119 = scmp.ne.s32.totalorder %s104, %s118
      %p120 = scmp.eq.s32.totalorder %s36, 0
      %p121 = por %p119, %p120
      %s122 = ssub.s32 %s30, %s37
      %p123 = scmp.eq.s32.totalorder %s122, 0
      %s125 = sadd.s32 %s124, 1
      %s126 = scalar_select %p123, %s124, %s125
      %p129 = pneg %p123
      %p130 = scmp.eq.s32.totalorder %s30, 2
      %p131 = por %p129, %p130
      %p132 = scmp.ne.s32.totalorder %s124, %s127
      %p133 = scmp.eq.s32.totalorder %s30, 0
      %p134 = por %p132, %p133
      %p135 = scmp.ne.s32.totalorder %s124, %s127
      %p136 = scmp.eq.s32.totalorder %s35, 2
      %p137 = por %p135, %p136
      %p138 = scmp.ne.s32.totalorder %s127, %s128
      %p139 = scmp.eq.s32.totalorder %s35, 0
      %p140 = por %p138, %p139
      %p141 = scmp.ne.s32.totalorder %s127, %s128
      %p142 = scmp.eq.s32.totalorder %s36, 2
      %p143 = por %p141, %p142
      %p145 = scmp.ne.s32.totalorder %s128, %s144
      %p146 = scmp.eq.s32.totalorder %s36, 0
      %p147 = por %p145, %p146
      %s148 = ssub.s32 %s30, %s37
      %p149 = scmp.eq.s32.totalorder %s148, 0
      %s151 = sadd.s32 %s150, 1
      %s152 = scalar_select %p149, %s150, %s151
      %p155 = pneg %p149
      %p156 = scmp.eq.s32.totalorder %s30, 2
      %p157 = por %p155, %p156
      %p158 = scmp.ne.s32.totalorder %s150, %s153
      %p159 = scmp.eq.s32.totalorder %s30, 0
      %p160 = por %p158, %p159
      %p161 = scmp.ne.s32.totalorder %s150, %s153
      %p162 = scmp.eq.s32.totalorder %s35, 2
      %p163 = por %p161, %p162
      %p164 = scmp.ne.s32.totalorder %s153, %s154
      %p165 = scmp.eq.s32.totalorder %s35, 0
      %p166 = por %p164, %p165
      %p167 = scmp.ne.s32.totalorder %s153, %s154
      %p168 = scmp.eq.s32.totalorder %s36, 2
      %p169 = por %p167, %p168
      %p171 = scmp.ne.s32.totalorder %s154, %s170
      %p172 = scmp.eq.s32.totalorder %s36, 0
      %p173 = por %p171, %p172
      %s174 = ssub.s32 %s30, %s37
      %p175 = scmp.eq.s32.totalorder %s174, 0
      %s177 = sadd.s32 %s176, 1
      %s178 = scalar_select %p175, %s176, %s177
      %p181 = pneg %p175
      %p182 = scmp.eq.s32.totalorder %s30, 2
      %p183 = por %p181, %p182
      %p184 = scmp.ne.s32.totalorder %s176, %s179
      %p185 = scmp.eq.s32.totalorder %s30, 0
      %p186 = por %p184, %p185
      %p187 = scmp.ne.s32.totalorder %s176, %s179
      %p188 = scmp.eq.s32.totalorder %s35, 2
      %p189 = por %p187, %p188
      %p190 = scmp.ne.s32.totalorder %s179, %s180
      %p191 = scmp.eq.s32.totalorder %s35, 0
      %p192 = por %p190, %p191
      %p193 = scmp.ne.s32.totalorder %s179, %s180
      %p194 = scmp.eq.s32.totalorder %s36, 2
      %p195 = por %p193, %p194
      %p197 = scmp.ne.s32.totalorder %s180, %s196
      %p198 = scmp.eq.s32.totalorder %s36, 0
      %p199 = por %p197, %p198
      %s200 = ssub.s32 %s30, %s37
      %p201 = scmp.eq.s32.totalorder %s200, 0
      %s203 = sadd.s32 %s202, 1
      %s204 = scalar_select %p201, %s202, %s203
      %p207 = pneg %p201
      %p208 = scmp.eq.s32.totalorder %s30, 2
      %p209 = por %p207, %p208
      %p210 = scmp.ne.s32.totalorder %s202, %s205
      %p211 = scmp.eq.s32.totalorder %s30, 0
      %p212 = por %p210, %p211
      %p213 = scmp.ne.s32.totalorder %s202, %s205
      %p214 = scmp.eq.s32.totalorder %s35, 2
      %p215 = por %p213, %p214
      %p216 = scmp.ne.s32.totalorder %s205, %s206
      %p217 = scmp.eq.s32.totalorder %s35, 0
      %p218 = por %p216, %p217
      %p219 = scmp.ne.s32.totalorder %s205, %s206
      %p220 = scmp.eq.s32.totalorder %s36, 2
      %p221 = por %p219, %p220
      %p223 = scmp.ne.s32.totalorder %s206, %s222
      %p224 = scmp.eq.s32.totalorder %s36, 0
      %p225 = por %p223, %p224
      %s226 = ssub.s32 %s30, %s37
      %p227 = scmp.eq.s32.totalorder %s226, 0
      %s229 = sadd.s32 %s228, 1
      %s230 = scalar_select %p227, %s228, %s229
      %p233 = pneg %p227
      %p234 = scmp.eq.s32.totalorder %s30, 2
      %p235 = por %p233, %p234
      %p236 = scmp.ne.s32.totalorder %s228, %s231
      %p237 = scmp.eq.s32.totalorder %s30, 0
      %p238 = por %p236, %p237
      %p239 = scmp.ne.s32.totalorder %s228, %s231
      %p240 = scmp.eq.s32.totalorder %s35, 2
      %p241 = por %p239, %p240
      %p242 = scmp.ne.s32.totalorder %s231, %s232
      %p243 = scmp.eq.s32.totalorder %s35, 0
      %p244 = por %p242, %p243
      %p245 = scmp.ne.s32.totalorder %s231, %s232
      %p246 = scmp.eq.s32.totalorder %s36, 2
      %p247 = por %p245, %p246
      %p249 = scmp.ne.s32.totalorder %s232, %s248
      %p250 = scmp.eq.s32.totalorder %s36, 0
      %p251 = por %p249, %p250
      %s252 = ssub.s32 %s30, %s37
      %p253 = scmp.eq.s32.totalorder %s252, 0
      %s255 = sadd.s32 %s254, 1
      %s256 = scalar_select %p253, %s254, %s255
      %p259 = pneg %p253
      %p260 = scmp.eq.s32.totalorder %s30, 2
      %p261 = por %p259, %p260
      %p262 = scmp.ne.s32.totalorder %s254, %s257
      %p263 = scmp.eq.s32.totalorder %s30, 0
      %p264 = por %p262, %p263
      %p265 = scmp.ne.s32.totalorder %s254, %s257
      %p266 = scmp.eq.s32.totalorder %s35, 2
      %p267 = por %p265, %p266
      %p268 = scmp.ne.s32.totalorder %s257, %s258
      %p269 = scmp.eq.s32.totalorder %s35, 0
      %p270 = por %p268, %p269
      %p271 = scmp.ne.s32.totalorder %s257, %s258
      %p272 = scmp.eq.s32.totalorder %s36, 2
      %p273 = por %p271, %p272
      %p275 = scmp.ne.s32.totalorder %s258, %s274
      %p276 = scmp.eq.s32.totalorder %s36, 0
      %p277 = por %p275, %p276
      %s278 = ssub.s32 %s30, %s37
      %p279 = scmp.eq.s32.totalorder %s278, 0
      %s281 = sadd.s32 %s280, 1
      %s282 = scalar_select %p279, %s280, %s281
      %p285 = pneg %p279
      %p286 = scmp.eq.s32.totalorder %s30, 2
      %p287 = por %p285, %p286
      %p288 = scmp.ne.s32.totalorder %s280, %s283
      %p289 = scmp.eq.s32.totalorder %s30, 0
      %p290 = por %p288, %p289
      %p291 = scmp.ne.s32.totalorder %s280, %s283
      %p292 = scmp.eq.s32.totalorder %s35, 2
      %p293 = por %p291, %p292
      %p294 = scmp.ne.s32.totalorder %s283, %s284
      %p295 = scmp.eq.s32.totalorder %s35, 0
      %p296 = por %p294, %p295
      %p297 = scmp.ne.s32.totalorder %s283, %s284
      %p298 = scmp.eq.s32.totalorder %s36, 2
      %p299 = por %p297, %p298
      %p301 = scmp.ne.s32.totalorder %s284, %s300
      %p302 = scmp.eq.s32.totalorder %s36, 0
      %p303 = por %p301, %p302
      %s304 = ssub.s32 %s30, %s37
      %p305 = scmp.eq.s32.totalorder %s304, 0
      %s307 = sadd.s32 %s306, 1
      %s308 = scalar_select %p305, %s306, %s307
      %p311 = pneg %p305
      %p312 = scmp.eq.s32.totalorder %s30, 2
      %p313 = por %p311, %p312
      %p314 = scmp.ne.s32.totalorder %s306, %s309
      %p315 = scmp.eq.s32.totalorder %s30, 0
      %p316 = por %p314, %p315
      %p317 = scmp.ne.s32.totalorder %s306, %s309
      %p318 = scmp.eq.s32.totalorder %s35, 2
      %p319 = por %p317, %p318
      %p320 = scmp.ne.s32.totalorder %s309, %s310
      %p321 = scmp.eq.s32.totalorder %s35, 0
      %p322 = por %p320, %p321
      %p323 = scmp.ne.s32.totalorder %s309, %s310
      %p324 = scmp.eq.s32.totalorder %s36, 2
      %p325 = por %p323, %p324
      %p327 = scmp.ne.s32.totalorder %s310, %s326
      %p328 = scmp.eq.s32.totalorder %s36, 0
      %p329 = por %p327, %p328
      %s330 = ssub.s32 %s30, %s37
      %p331 = scmp.eq.s32.totalorder %s330, 0
      %s333 = sadd.s32 %s332, 1
      %s334 = scalar_select %p331, %s332, %s333
      %p337 = pneg %p331
      %p338 = scmp.eq.s32.totalorder %s30, 2
      %p339 = por %p337, %p338
      %p340 = scmp.ne.s32.totalorder %s332, %s335
      %p341 = scmp.eq.s32.totalorder %s30, 0
      %p342 = por %p340, %p341
      %p343 = scmp.ne.s32.totalorder %s332, %s335
      %p344 = scmp.eq.s32.totalorder %s35, 2
      %p345 = por %p343, %p344
      %p346 = scmp.ne.s32.totalorder %s335, %s336
      %p347 = scmp.eq.s32.totalorder %s35, 0
      %p348 = por %p346, %p347
      %p349 = scmp.ne.s32.totalorder %s335, %s336
      %p350 = scmp.eq.s32.totalorder %s36, 2
      %p351 = por %p349, %p350
      %p353 = scmp.ne.s32.totalorder %s336, %s352
      %p354 = scmp.eq.s32.totalorder %s36, 0
      %p355 = por %p353, %p354
      %s356 = ssub.s32 %s30, %s37
      %p357 = scmp.eq.s32.totalorder %s356, 0
      %s359 = sadd.s32 %s358, 1
      %s360 = scalar_select %p357, %s358, %s359
      %p363 = pneg %p357
      %p364 = scmp.eq.s32.totalorder %s30, 2
      %p365 = por %p363, %p364
      %p366 = scmp.ne.s32.totalorder %s358, %s361
      %p367 = scmp.eq.s32.totalorder %s30, 0
      %p368 = por %p366, %p367
      %p369 = scmp.ne.s32.totalorder %s358, %s361
      %p370 = scmp.eq.s32.totalorder %s35, 2
      %p371 = por %p369, %p370
      %p372 = scmp.ne.s32.totalorder %s361, %s362
      %p373 = scmp.eq.s32.totalorder %s35, 0
      %p374 = por %p372, %p373
      %p375 = scmp.ne.s32.totalorder %s361, %s362
      %p376 = scmp.eq.s32.totalorder %s36, 2
      %p377 = por %p375, %p376
      %p379 = scmp.ne.s32.totalorder %s362, %s378
      %p380 = scmp.eq.s32.totalorder %s36, 0
      %p381 = por %p379, %p380
      %s382 = ssub.s32 %s30, %s37
      %p383 = scmp.eq.s32.totalorder %s382, 0
      %s385 = sadd.s32 %s384, 1
      %s386 = scalar_select %p383, %s384, %s385
      %p389 = pneg %p383
      %p390 = scmp.eq.s32.totalorder %s30, 2
      %p391 = por %p389, %p390
      %p392 = scmp.ne.s32.totalorder %s384, %s387
      %p393 = scmp.eq.s32.totalorder %s30, 0
      %p394 = por %p392, %p393
      %p395 = scmp.ne.s32.totalorder %s384, %s387
      %p396 = scmp.eq.s32.totalorder %s35, 2
      %p397 = por %p395, %p396
      %p398 = scmp.ne.s32.totalorder %s387, %s388
      %p399 = scmp.eq.s32.totalorder %s35, 0
      %p400 = por %p398, %p399
      %p401 = scmp.ne.s32.totalorder %s387, %s388
      %p402 = scmp.eq.s32.totalorder %s36, 2
      %p403 = por %p401, %p402
      %p405 = scmp.ne.s32.totalorder %s388, %s404
      %p406 = scmp.eq.s32.totalorder %s36, 0
      %p407 = por %p405, %p406
      %s408 = ssub.s32 %s30, %s37
      %p409 = scmp.eq.s32.totalorder %s408, 0
      %s411 = sadd.s32 %s410, 1
      %s412 = scalar_select %p409, %s410, %s411
      %p415 = pneg %p409
      %p416 = scmp.eq.s32.totalorder %s30, 2
      %p417 = por %p415, %p416
      %p418 = scmp.ne.s32.totalorder %s410, %s413
      %p419 = scmp.eq.s32.totalorder %s30, 0
      %p420 = por %p418, %p419
      %p421 = scmp.ne.s32.totalorder %s410, %s413
      %p422 = scmp.eq.s32.totalorder %s35, 2
      %p423 = por %p421, %p422
      %p424 = scmp.ne.s32.totalorder %s413, %s414
      %p425 = scmp.eq.s32.totalorder %s35, 0
      %p426 = por %p424, %p425
      %p427 = scmp.ne.s32.totalorder %s413, %s414
      %p428 = scmp.eq.s32.totalorder %s36, 2
      %p429 = por %p427, %p428
      %p431 = scmp.ne.s32.totalorder %s414, %s430
      %p432 = scmp.eq.s32.totalorder %s36, 0
      %p433 = por %p431, %p432
      %s435 = sadd.s32 %s434, 1
      %p438 = scmp.eq.s32.totalorder %s30, 2
      %p439 = scmp.ne.s32.totalorder %s434, %s436
      %p440 = scmp.eq.s32.totalorder %s30, 0
      %p441 = por %p439, %p440
      %p442 = scmp.ne.s32.totalorder %s434, %s436
      %p443 = scmp.eq.s32.totalorder %s35, 2
      %p444 = por %p442, %p443
      %p445 = scmp.ne.s32.totalorder %s436, %s437
      %p446 = scmp.eq.s32.totalorder %s35, 0
      %p447 = por %p445, %p446
      %p448 = scmp.ne.s32.totalorder %s436, %s437
      %p449 = scmp.eq.s32.totalorder %s36, 2
      %p450 = por %p448, %p449
      %p452 = scmp.ne.s32.totalorder %s437, %s451
      %p453 = scmp.eq.s32.totalorder %s36, 0
      %p454 = por %p452, %p453
      %s456 = sadd.s32 %s455, 1
      %p459 = scmp.eq.s32.totalorder %s30, 2
      %p460 = scmp.ne.s32.totalorder %s455, %s457
      %p461 = scmp.eq.s32.totalorder %s30, 0
      %p462 = por %p460, %p461
      %p463 = scmp.ne.s32.totalorder %s455, %s457
      %p464 = scmp.eq.s32.totalorder %s35, 2
      %p465 = por %p463, %p464
      %p466 = scmp.ne.s32.totalorder %s457, %s458
      %p467 = scmp.eq.s32.totalorder %s35, 0
      %p468 = por %p466, %p467
      %p469 = scmp.ne.s32.totalorder %s457, %s458
      %p470 = scmp.eq.s32.totalorder %s36, 2
      %p471 = por %p469, %p470
      %p473 = scmp.ne.s32.totalorder %s458, %s472
      %p474 = scmp.eq.s32.totalorder %s36, 0
      %p475 = por %p473, %p474
      %s477 = sadd.s32 %s476, 1
      %p480 = scmp.eq.s32.totalorder %s30, 2
      %p481 = scmp.ne.s32.totalorder %s476, %s478
      %p482 = scmp.eq.s32.totalorder %s30, 0
      %p483 = por %p481, %p482
      %p484 = scmp.ne.s32.totalorder %s476, %s478
      %p485 = scmp.eq.s32.totalorder %s35, 2
      %p486 = por %p484, %p485
      %p487 = scmp.ne.s32.totalorder %s478, %s479
      %p488 = scmp.eq.s32.totalorder %s35, 0
      %p489 = por %p487, %p488
      %p490 = scmp.ne.s32.totalorder %s478, %s479
      %p491 = scmp.eq.s32.totalorder %s36, 2
      %p492 = por %p490, %p491
      %p494 = scmp.ne.s32.totalorder %s479, %s493
      %p495 = scmp.eq.s32.totalorder %s36, 0
      %p496 = por %p494, %p495
      %p497 = scmp.le.s32.totalorder 1, %s30
      %p498 = scmp.lt.s32.totalorder %s30, 4
      %p499 = pnand %p497, %p498
      %p500 = pneg %p499
      // Predicated region
      $region9: #{tpu_custom_call.1} parent=5 // pred_check
        _
      $region10: #{tpu_custom_call.1} parent=5 // pred_check_branch
        %502 = sbr.rel (%p499) target = $region12
      $region11: #{tpu_custom_call.1} parent=5 // pred_region
        %s503 = ssub.s32 %s30, 1
        // Predicated region
        $region13: #{tpu_custom_call.1} parent=11 // pred_check
          %p504 = pneg %p51
        $region14: #{tpu_custom_call.1} parent=11 // pred_check_branch
          %506 = sbr.rel (%p504) target = $region16
        $region15: #{tpu_custom_call.1} parent=11 // pred_region
          %s508 = ssub.s32 256, 256
          %509 = vsyncadd [#allocation4], %s508
          %s510 = sshll.u32 [#allocation3], 4
          %s511 = int_to_ptr.vmem [resolvable:$true] %s510
          %516 = dma.hbm_to_vmem [thread:$0]  %s0, 256, %s511, [#allocation4], 128, 128, 8
        $region16: #{tpu_custom_call.1} parent=11 // pred_fallthru
          _
        // Predicated region
        $region17: #{tpu_custom_call.1} parent=11 // pred_check
          %p517 = pneg %p72
        $region18: #{tpu_custom_call.1} parent=11 // pred_check_branch
          %519 = sbr.rel (%p517) target = $region20
        $region19: #{tpu_custom_call.1} parent=11 // pred_region
          %s521 = ssub.s32 16, 16
          %522 = vsyncadd [#allocation7], %s521
          %s524 = sshll.u32 [#allocation6], 4
          %s525 = int_to_ptr.vmem [resolvable:$true] %s524
          %527 = dma.hbm_to_vmem [thread:$0]  %s1, 16, %s525, [#allocation7]
        $region20: #{tpu_custom_call.1} parent=11 // pred_fallthru
          _
        // Predicated region
        $region21: #{tpu_custom_call.1} parent=11 // pred_check
          %p528 = pneg %p93
        $region22: #{tpu_custom_call.1} parent=11 // pred_check_branch
          %530 = sbr.rel (%p528) target = $region24
        $region23: #{tpu_custom_call.1} parent=11 // pred_region
          %s532 = ssub.s32 16, 16
          %533 = vsyncadd [#allocation7], %s532
          %s535 = sshll.u32 [#allocation8], 4
          %s536 = int_to_ptr.vmem [resolvable:$true] %s535
          %538 = dma.hbm_to_vmem [thread:$0]  %s2, 16, %s536, [#allocation7]
        $region24: #{tpu_custom_call.1} parent=11 // pred_fallthru
          _
        // Predicated region
        $region25: #{tpu_custom_call.1} parent=11 // pred_check
          %p539 = pneg %p114
        $region26: #{tpu_custom_call.1} parent=11 // pred_check_branch
          %541 = sbr.rel (%p539) target = $region28
        $region27: #{tpu_custom_call.1} parent=11 // pred_region
          %s543 = ssub.s32 32, 32
          %544 = vsyncadd [#allocation10], %s543
          %s545 = sshll.u32 [#allocation9], 4
          %s546 = int_to_ptr.vmem [resolvable:$true] %s545
          %551 = dma.hbm_to_vmem [thread:$0]  %s3, 32, %s546, [#allocation10], 16, 16, 1
        $region28: #{tpu_custom_call.1} parent=11 // pred_fallthru
          _
      $region12: #{tpu_custom_call.1} parent=5 // pred_fallthru
        _
      %p552 = scmp.lt.s32.totalorder %s30, 3
      // Predicated region
      $region29: #{tpu_custom_call.1} parent=5 // pred_check
        %p553 = pneg %p552
      $region30: #{tpu_custom_call.1} parent=5 // pred_check_branch
        %555 = sbr.rel (%p553) target = $region32
      $region31: #{tpu_custom_call.1} parent=5 // pred_region
        // Predicated region
        $region33: #{tpu_custom_call.1} parent=31 // pred_check
          %p556 = pneg %p134
        $region34: #{tpu_custom_call.1} parent=31 // pred_check_branch
          %558 = sbr.rel (%p556) target = $region36
        $region35: #{tpu_custom_call.1} parent=31 // pred_region
          %s559 = sand.u32 %s30, 1
          %s560 = scalar_lea.sflag [#allocation4], %s559
          %s561 = sand.u32 %s124, 1
          %s562 = smul.addr %s561, 192
          %s563 = scalar_lea.vmem [#allocation11], %s562
          %s565 = ssub.s32 3072, 3072
          %566 = vsyncadd %s560, %s565
          %s567 = smul.addr %s30, 48
          %s568 = smul.addr %s567, 64
          %s569 = scalar_lea.hbm %s4, %s568
          %s570 = sshll.u32 %s563, 4
          %s571 = int_to_ptr.vmem [resolvable:$true] %s570
          %576 = dma.hbm_to_vmem [thread:$0]  %s569, 3072, %s571, %s560, 192, 192, 12
        $region36: #{tpu_custom_call.1} parent=31 // pred_fallthru
          _
        // Predicated region
        $region37: #{tpu_custom_call.1} parent=31 // pred_check
          %p577 = pneg %p160
        $region38: #{tpu_custom_call.1} parent=31 // pred_check_branch
          %579 = sbr.rel (%p577) target = $region40
        $region39: #{tpu_custom_call.1} parent=31 // pred_region
          %p580 = scmp.lt.s32.totalorder %s30, 2
          %s581 = scalar_select %p580, %s30, 2
          %s582 = smul.addr %s581, 3
          %s583 = scalar_lea.vmem %s5, %s582
        $region40: #{tpu_custom_call.1} parent=31 // pred_fallthru
          _
        // Predicated region
        $region41: #{tpu_custom_call.1} parent=31 // pred_check
          %p584 = pneg %p186
        $region42: #{tpu_custom_call.1} parent=31 // pred_check_branch
          %586 = sbr.rel (%p584) target = $region44
        $region43: #{tpu_custom_call.1} parent=31 // pred_region
          %s587 = sand.u32 %s30, 1
          %s588 = scalar_lea.sflag [#allocation4], %s587
          %s589 = sand.u32 %s176, 1
          %s590 = smul.addr %s589, 64
          %s591 = scalar_lea.vmem [#allocation12], %s590
          %s593 = ssub.s32 1024, 1024
          %594 = vsyncadd %s588, %s593
          %s595 = smul.addr %s30, 16
          %s596 = smul.addr %s595, 64
          %s597 = scalar_lea.hbm %s6, %s596
          %s598 = sshll.u32 %s591, 4
          %s599 = int_to_ptr.vmem [resolvable:$true] %s598
          %604 = dma.hbm_to_vmem [thread:$0]  %s597, 1024, %s599, %s588, 64, 64, 4
        $region44: #{tpu_custom_call.1} parent=31 // pred_fallthru
          _
        // Predicated region
        $region45: #{tpu_custom_call.1} parent=31 // pred_check
          %p605 = pneg %p212
        $region46: #{tpu_custom_call.1} parent=31 // pred_check_branch
          %607 = sbr.rel (%p605) target = $region48
        $region47: #{tpu_custom_call.1} parent=31 // pred_region
          %p608 = scmp.lt.s32.totalorder %s30, 2
          %s609 = scalar_select %p608, %s30, 2
          %s610 = scalar_lea.vmem %s7, %s609
        $region48: #{tpu_custom_call.1} parent=31 // pred_fallthru
          _
        // Predicated region
        $region49: #{tpu_custom_call.1} parent=31 // pred_check
          %p611 = pneg %p238
        $region50: #{tpu_custom_call.1} parent=31 // pred_check_branch
          %613 = sbr.rel (%p611) target = $region52
        $region51: #{tpu_custom_call.1} parent=31 // pred_region
          %s614 = sand.u32 %s30, 1
          %s615 = scalar_lea.sflag [#allocation4], %s614
          %s616 = sand.u32 %s228, 1
          %s617 = smul.addr %s616, 128
          %s618 = scalar_lea.vmem [#allocation13], %s617
          %s620 = ssub.s32 2048, 2048
          %621 = vsyncadd %s615, %s620
          %s622 = smul.addr %s30, 32
          %s623 = smul.addr %s622, 64
          %s624 = scalar_lea.hbm %s8, %s623
          %s625 = sshll.u32 %s618, 4
          %s626 = int_to_ptr.vmem [resolvable:$true] %s625
          %631 = dma.hbm_to_vmem [thread:$0]  %s624, 2048, %s626, %s615, 128, 128, 8
        $region52: #{tpu_custom_call.1} parent=31 // pred_fallthru
          _
        // Predicated region
        $region53: #{tpu_custom_call.1} parent=31 // pred_check
          %p632 = pneg %p264
        $region54: #{tpu_custom_call.1} parent=31 // pred_check_branch
          %634 = sbr.rel (%p632) target = $region56
        $region55: #{tpu_custom_call.1} parent=31 // pred_region
          %p635 = scmp.lt.s32.totalorder %s30, 2
          %s636 = scalar_select %p635, %s30, 2
          %s637 = smul.addr %s636, 2
          %s638 = scalar_lea.vmem %s9, %s637
        $region56: #{tpu_custom_call.1} parent=31 // pred_fallthru
          _
        // Predicated region
        $region57: #{tpu_custom_call.1} parent=31 // pred_check
          %p639 = pneg %p290
        $region58: #{tpu_custom_call.1} parent=31 // pred_check_branch
          %641 = sbr.rel (%p639) target = $region60
        $region59: #{tpu_custom_call.1} parent=31 // pred_region
          %s642 = sand.u32 %s30, 1
          %s643 = scalar_lea.sflag [#allocation4], %s642
          %s644 = sand.u32 %s280, 1
          %s645 = smul.addr %s644, 128
          %s646 = scalar_lea.vmem [#allocation14], %s645
          %s648 = ssub.s32 2048, 2048
          %649 = vsyncadd %s643, %s648
          %s650 = smul.addr %s30, 32
          %s651 = smul.addr %s650, 64
          %s652 = scalar_lea.hbm %s10, %s651
          %s653 = sshll.u32 %s646, 4
          %s654 = int_to_ptr.vmem [resolvable:$true] %s653
          %659 = dma.hbm_to_vmem [thread:$0]  %s652, 2048, %s654, %s643, 64, 64, 4
        $region60: #{tpu_custom_call.1} parent=31 // pred_fallthru
          _
        // Predicated region
        $region61: #{tpu_custom_call.1} parent=31 // pred_check
          %p660 = pneg %p316
        $region62: #{tpu_custom_call.1} parent=31 // pred_check_branch
          %662 = sbr.rel (%p660) target = $region64
        $region63: #{tpu_custom_call.1} parent=31 // pred_region
          %p663 = scmp.lt.s32.totalorder %s30, 2
          %s664 = scalar_select %p663, %s30, 2
          %s665 = scalar_lea.vmem %s11, %s664
        $region64: #{tpu_custom_call.1} parent=31 // pred_fallthru
          _
        // Predicated region
        $region65: #{tpu_custom_call.1} parent=31 // pred_check
          %p666 = pneg %p342
        $region66: #{tpu_custom_call.1} parent=31 // pred_check_branch
          %668 = sbr.rel (%p666) target = $region68
        $region67: #{tpu_custom_call.1} parent=31 // pred_region
          %p669 = scmp.lt.s32.totalorder %s30, 2
          %s670 = scalar_select %p669, %s30, 2
          %s671 = scalar_lea.vmem %s12, %s670
        $region68: #{tpu_custom_call.1} parent=31 // pred_fallthru
          _
        // Predicated region
        $region69: #{tpu_custom_call.1} parent=31 // pred_check
          %p672 = pneg %p368
        $region70: #{tpu_custom_call.1} parent=31 // pred_check_branch
          %674 = sbr.rel (%p672) target = $region72
        $region71: #{tpu_custom_call.1} parent=31 // pred_region
          %p675 = scmp.lt.s32.totalorder %s30, 2
          %s676 = scalar_select %p675, %s30, 2
          %s677 = scalar_lea.vmem %s13, %s676
        $region72: #{tpu_custom_call.1} parent=31 // pred_fallthru
          _
        // Predicated region
        $region73: #{tpu_custom_call.1} parent=31 // pred_check
          %p678 = pneg %p394
        $region74: #{tpu_custom_call.1} parent=31 // pred_check_branch
          %680 = sbr.rel (%p678) target = $region76
        $region75: #{tpu_custom_call.1} parent=31 // pred_region
          %p681 = scmp.lt.s32.totalorder %s30, 2
          %s682 = scalar_select %p681, %s30, 2
          %s683 = scalar_lea.vmem %s14, %s682
        $region76: #{tpu_custom_call.1} parent=31 // pred_fallthru
          _
        // Predicated region
        $region77: #{tpu_custom_call.1} parent=31 // pred_check
          %p684 = pneg %p420
        $region78: #{tpu_custom_call.1} parent=31 // pred_check_branch
          %686 = sbr.rel (%p684) target = $region80
        $region79: #{tpu_custom_call.1} parent=31 // pred_region
          %p687 = scmp.lt.s32.totalorder %s30, 2
          %s688 = scalar_select %p687, %s30, 2
          %s689 = scalar_lea.vmem %s15, %s688
        $region80: #{tpu_custom_call.1} parent=31 // pred_fallthru
          _
      $region32: #{tpu_custom_call.1} parent=5 // pred_fallthru
        _
      %p690 = scmp.le.s32.totalorder 1, %s30
      %p691 = scmp.lt.s32.totalorder %s30, 4
      %p692 = pnand %p690, %p691
      %p693 = pneg %p692
      // Predicated region
      $region81: #{tpu_custom_call.1} parent=5 // pred_check
        _
      $region82: #{tpu_custom_call.1} parent=5 // pred_check_branch
        %695 = sbr.rel (%p692) target = $region84
      $region83: #{tpu_custom_call.1} parent=5 // pred_region
        %s696 = ssub.s32 %s30, 1
        // Predicated region
        $region85: #{tpu_custom_call.1} parent=83 // pred_check
          %p697 = pneg %p51
        $region86: #{tpu_custom_call.1} parent=83 // pred_check_branch
          %699 = sbr.rel (%p697) target = $region88
        $region87: #{tpu_custom_call.1} parent=83 // pred_region
          %700 = dma.done [#allocation4], 256
        $region88: #{tpu_custom_call.1} parent=83 // pred_fallthru
          _
        // Predicated region
        $region89: #{tpu_custom_call.1} parent=83 // pred_check
          %p701 = pneg %p72
        $region90: #{tpu_custom_call.1} parent=83 // pred_check_branch
          %703 = sbr.rel (%p701) target = $region92
        $region91: #{tpu_custom_call.1} parent=83 // pred_region
          %704 = dma.done [#allocation7], 16
        $region92: #{tpu_custom_call.1} parent=83 // pred_fallthru
          _
        // Predicated region
        $region93: #{tpu_custom_call.1} parent=83 // pred_check
          %p705 = pneg %p93
        $region94: #{tpu_custom_call.1} parent=83 // pred_check_branch
          %707 = sbr.rel (%p705) target = $region96
        $region95: #{tpu_custom_call.1} parent=83 // pred_region
          %708 = dma.done [#allocation7], 16
        $region96: #{tpu_custom_call.1} parent=83 // pred_fallthru
          _
        // Predicated region
        $region97: #{tpu_custom_call.1} parent=83 // pred_check
          %p709 = pneg %p114
        $region98: #{tpu_custom_call.1} parent=83 // pred_check_branch
          %711 = sbr.rel (%p709) target = $region100
        $region99: #{tpu_custom_call.1} parent=83 // pred_region
          %712 = dma.done [#allocation10], 32
        $region100: #{tpu_custom_call.1} parent=83 // pred_fallthru
          _
        %s713 = sand.u32 %s35, 1
        %s714 = scalar_lea.sflag [#allocation4], %s713
        %s715 = sand.u32 %s127, 1
        %s716 = smul.addr %s715, 192
        %s717 = scalar_lea.vmem [#allocation11], %s716
        // Predicated region
        $region101: #{tpu_custom_call.1} parent=83 // pred_check
          %p718 = pneg %p140
        $region102: #{tpu_custom_call.1} parent=83 // pred_check_branch
          %720 = sbr.rel (%p718) target = $region104
        $region103: #{tpu_custom_call.1} parent=83 // pred_region
          %721 = dma.done %s714, 3072
        $region104: #{tpu_custom_call.1} parent=83 // pred_fallthru
          _
        %s722 = sand.u32 %s35, 1
        %s723 = scalar_lea.sflag [#allocation4], %s722
        %s724 = sand.u32 %s179, 1
        %s725 = smul.addr %s724, 64
        %s726 = scalar_lea.vmem [#allocation12], %s725
        // Predicated region
        $region105: #{tpu_custom_call.1} parent=83 // pred_check
          %p727 = pneg %p192
        $region106: #{tpu_custom_call.1} parent=83 // pred_check_branch
          %729 = sbr.rel (%p727) target = $region108
        $region107: #{tpu_custom_call.1} parent=83 // pred_region
          %730 = dma.done %s723, 1024
        $region108: #{tpu_custom_call.1} parent=83 // pred_fallthru
          _
        %s731 = sand.u32 %s35, 1
        %s732 = scalar_lea.sflag [#allocation4], %s731
        %s733 = sand.u32 %s231, 1
        %s734 = smul.addr %s733, 128
        %s735 = scalar_lea.vmem [#allocation13], %s734
        // Predicated region
        $region109: #{tpu_custom_call.1} parent=83 // pred_check
          %p736 = pneg %p244
        $region110: #{tpu_custom_call.1} parent=83 // pred_check_branch
          %738 = sbr.rel (%p736) target = $region112
        $region111: #{tpu_custom_call.1} parent=83 // pred_region
          %739 = dma.done %s732, 2048
        $region112: #{tpu_custom_call.1} parent=83 // pred_fallthru
          _
        %s740 = sand.u32 %s35, 1
        %s741 = scalar_lea.sflag [#allocation4], %s740
        %s742 = sand.u32 %s283, 1
        %s743 = smul.addr %s742, 128
        %s744 = scalar_lea.vmem [#allocation14], %s743
        // Predicated region
        $region113: #{tpu_custom_call.1} parent=83 // pred_check
          %p745 = pneg %p296
        $region114: #{tpu_custom_call.1} parent=83 // pred_check_branch
          %747 = sbr.rel (%p745) target = $region116
        $region115: #{tpu_custom_call.1} parent=83 // pred_region
          %748 = dma.done %s741, 2048
        $region116: #{tpu_custom_call.1} parent=83 // pred_fallthru
          _
        %p749 = pneg %p51
        %p750 = pneg %p48
        %p751 = pneg %p72
        %p752 = pneg %p69
        %p753 = pneg %p93
        %p754 = pneg %p90
        %p755 = pneg %p114
        %p756 = pneg %p111
        %s757 = sand.u32 %s35, 1
        %s758 = scalar_lea.sflag [#allocation4], %s757
        %s759 = sand.u32 %s127, 1
        %s760 = smul.addr %s759, 192
        %s761 = scalar_lea.vmem [#allocation11], %s760
        %p762 = pneg %p140
        %p763 = pneg %p137
        %p764 = scmp.lt.s32.totalorder %s35, 2
        %s765 = scalar_select %p764, %s35, 2
        %s766 = smul.addr %s765, 3
        %s767 = scalar_lea.vmem %s5, %s766
        %p768 = pneg %p166
        %p769 = pneg %p163
        %s770 = sand.u32 %s35, 1
        %s771 = scalar_lea.sflag [#allocation4], %s770
        %s772 = sand.u32 %s179, 1
        %s773 = smul.addr %s772, 64
        %s774 = scalar_lea.vmem [#allocation12], %s773
        %p775 = pneg %p192
        %p776 = pneg %p189
        %p777 = scmp.lt.s32.totalorder %s35, 2
        %s778 = scalar_select %p777, %s35, 2
        %s779 = scalar_lea.vmem %s7, %s778
        %p780 = pneg %p218
        %p781 = pneg %p215
        %s782 = sand.u32 %s35, 1
        %s783 = scalar_lea.sflag [#allocation4], %s782
        %s784 = sand.u32 %s231, 1
        %s785 = smul.addr %s784, 128
        %s786 = scalar_lea.vmem [#allocation13], %s785
        %p787 = pneg %p244
        %p788 = pneg %p241
        %p789 = scmp.lt.s32.totalorder %s35, 2
        %s790 = scalar_select %p789, %s35, 2
        %s791 = smul.addr %s790, 2
        %s792 = scalar_lea.vmem %s9, %s791
        %p793 = pneg %p270
        %p794 = pneg %p267
        %s795 = sand.u32 %s35, 1
        %s796 = scalar_lea.sflag [#allocation4], %s795
        %s797 = sand.u32 %s283, 1
        %s798 = smul.addr %s797, 128
        %s799 = scalar_lea.vmem [#allocation14], %s798
        %p800 = pneg %p296
        %p801 = pneg %p293
        %p802 = scmp.lt.s32.totalorder %s35, 2
        %s803 = scalar_select %p802, %s35, 2
        %s804 = scalar_lea.vmem %s11, %s803
        %p805 = pneg %p322
        %p806 = pneg %p319
        %p807 = scmp.lt.s32.totalorder %s35, 2
        %s808 = scalar_select %p807, %s35, 2
        %s809 = scalar_lea.vmem %s12, %s808
        %p810 = pneg %p348
        %p811 = pneg %p345
        %p812 = scmp.lt.s32.totalorder %s35, 2
        %s813 = scalar_select %p812, %s35, 2
        %s814 = scalar_lea.vmem %s13, %s813
        %p815 = pneg %p374
        %p816 = pneg %p371
        %p817 = scmp.lt.s32.totalorder %s35, 2
        %s818 = scalar_select %p817, %s35, 2
        %s819 = scalar_lea.vmem %s14, %s818
        %p820 = pneg %p400
        %p821 = pneg %p397
        %p822 = scmp.lt.s32.totalorder %s35, 2
        %s823 = scalar_select %p822, %s35, 2
        %s824 = scalar_lea.vmem %s15, %s823
        %p825 = pneg %p426
        %p826 = pneg %p423
        %p827 = pneg %p447
        %p828 = pneg %p444
        %p829 = pneg %p468
        %p830 = pneg %p465
        %p831 = pneg %p489
        %p832 = pneg %p486
        %p833 = scmp.lt.s32.totalorder %s35, 2
        %s834 = scalar_select %p833, %s35, 2
        %s835 = smul.addr %s834, 3
        %s836 = scalar_lea.vmem %s5, %s835
        %p837 = scmp.lt.s32.totalorder %s35, 2
        %s838 = scalar_select %p837, %s35, 2
        %s839 = scalar_lea.vmem %s7, %s838
        %p840 = scmp.lt.s32.totalorder %s35, 2
        %s841 = scalar_select %p840, %s35, 2
        %s842 = smul.addr %s841, 2
        %s843 = scalar_lea.vmem %s9, %s842
        %p844 = scmp.lt.s32.totalorder %s35, 2
        %s845 = scalar_select %p844, %s35, 2
        %s846 = scalar_lea.vmem %s11, %s845
        %p847 = scmp.lt.s32.totalorder %s35, 2
        %s848 = scalar_select %p847, %s35, 2
        %s849 = scalar_lea.vmem %s12, %s848
        %p850 = scmp.lt.s32.totalorder %s35, 2
        %s851 = scalar_select %p850, %s35, 2
        %s852 = scalar_lea.vmem %s13, %s851
        %p853 = scmp.lt.s32.totalorder %s35, 2
        %s854 = scalar_select %p853, %s35, 2
        %s855 = scalar_lea.vmem %s14, %s854
        %p856 = scmp.lt.s32.totalorder %s35, 2
        %s857 = scalar_select %p856, %s35, 2
        %s858 = scalar_lea.vmem %s15, %s857
        %p860 = scmp.eq.s32.totalorder %s35, 0
        // Predicated region
        $region117: #{tpu_custom_call.1} parent=83 // pred_check
          %p861 = pneg %p860
        $region118: #{tpu_custom_call.1} parent=83 // pred_check_branch
          %863 = sbr.rel (%p861) target = $region120
        $region119: #{tpu_custom_call.1} parent=83 // pred_region
          %v864 = vld [vmem:[#allocation3] sm:$0xff]
          %v865 = vld [vmem:[#allocation3 + $0x8] sm:$0xff]
          %v866 = vld [vmem:[#allocation6] sm:$0x1]
          %v867 = vld [vmem:[#allocation8] sm:$0x1]
          %868 = vadd.xlane.f32.xlu0 %v864
          %v869 = vpop.xlane.xlu0 %868
          %870 = vadd.xlane.f32.xlu0 %v865
          %v871 = vpop.xlane.xlu0 %870
          %v872 = vrcp.pop 128.0
          %v873 = vmul.f32 %v869, %v872
          %v874 = vmul.f32 %v871, %v872
          %v875 = vsub.f32 %v864, %v873
          %v876 = vsub.f32 %v865, %v874
          %v877 = vmul.f32 %v875, %v875
          %v878 = vmul.f32 %v876, %v876
          %879 = vadd.xlane.f32.xlu0 %v877
          %v880 = vpop.xlane.xlu0 %879
          %881 = vadd.xlane.f32.xlu0 %v878
          %v882 = vpop.xlane.xlu0 %881
          %v883 = vmul.f32 %v880, %v872
          %v884 = vmul.f32 %v882, %v872
          %v885 = vadd.f32 %v883, 1e-12
          %v886 = vadd.f32 %v884, 1e-12
          %v887 = vrsqrt.pop %v885
          %v888 = vrsqrt.pop %v886
          %v889 = vmul.f32 %v875, %v887
          %v890 = vmul.f32 %v876, %v888
          %v892 = vlaneseq
          %v893 = vshrl.u32 %v892, 7
          %v894 = vsub.s32 0, %v893
          %v895 = vrot.slane %v866, %v894
          %v897 = vmul.f32 %v889, %v895
          %v898 = vmul.f32 %v890, %v895
          %v900 = vlaneseq
          %v901 = vshrl.u32 %v900, 7
          %v902 = vsub.s32 0, %v901
          %v903 = vrot.slane %v867, %v902
          %v905 = vadd.f32 %v897, %v903
          %v906 = vadd.f32 %v898, %v903
          %907 = vst [vmem:[#allocation2] sm:$0xff] %v905
          %908 = vst [vmem:[#allocation2 + $0x8] sm:$0xff] %v906
        $region120: #{tpu_custom_call.1} parent=83 // pred_fallthru
          _
        %v909 = vld [vmem:[#allocation2] sm:$0xff]
        %v910 = vld [vmem:[#allocation2 + $0x8] sm:$0xff]
        %v911 = vpack.c.bf16 %v910, %v909
        %v912 = vld [vmem:[%s717] sm:$0xff]
        %v913 = vld [vmem:[%s717 + $0x8] sm:$0xf]
        %v914 = vld [vmem:[%s717 + $0xc] sm:$0xff]
        %v915 = vld [vmem:[%s717 + $0x14] sm:$0xf]
        %v916 = vld [vmem:[%s717 + $0x18] sm:$0xff]
        %v917 = vld [vmem:[%s717 + $0x20] sm:$0xf]
        %v918 = vld [vmem:[%s717 + $0x24] sm:$0xff]
        %v919 = vld [vmem:[%s717 + $0x2c] sm:$0xf]
        %v920 = vld [vmem:[%s717 + $0x30] sm:$0xff]
        %v921 = vld [vmem:[%s717 + $0x38] sm:$0xf]
        %v922 = vld [vmem:[%s717 + $0x3c] sm:$0xff]
        %v923 = vld [vmem:[%s717 + $0x44] sm:$0xf]
        %v924 = vld [vmem:[%s717 + $0x48] sm:$0xff]
        %v925 = vld [vmem:[%s717 + $0x50] sm:$0xf]
        %v926 = vld [vmem:[%s717 + $0x54] sm:$0xff]
        %v927 = vld [vmem:[%s717 + $0x5c] sm:$0xf]
        %v928 = vld [vmem:[%s717 + $0x60] sm:$0xff]
        %v929 = vld [vmem:[%s717 + $0x68] sm:$0xf]
        %v930 = vld [vmem:[%s717 + $0x6c] sm:$0xff]
        %v931 = vld [vmem:[%s717 + $0x74] sm:$0xf]
        %v932 = vld [vmem:[%s717 + $0x78] sm:$0xff]
        %v933 = vld [vmem:[%s717 + $0x80] sm:$0xf]
        %v934 = vld [vmem:[%s717 + $0x84] sm:$0xff]
        %v935 = vld [vmem:[%s717 + $0x8c] sm:$0xf]
        %v936 = vld [vmem:[%s717 + $0x90] sm:$0xff]
        %v937 = vld [vmem:[%s717 + $0x98] sm:$0xf]
        %v938 = vld [vmem:[%s717 + $0x9c] sm:$0xff]
        %v939 = vld [vmem:[%s717 + $0xa4] sm:$0xf]
        %v940 = vld [vmem:[%s717 + $0xa8] sm:$0xff]
        %v941 = vld [vmem:[%s717 + $0xb0] sm:$0xf]
        %v942 = vld [vmem:[%s717 + $0xb4] sm:$0xff]
        %v943 = vld [vmem:[%s717 + $0xbc] sm:$0xf]
        %v944 = vld [vmem:[%s836] sm:$0x7]
        %v946 = vlaneseq
        %v947 = vshrl.u32 %v946, 7
        %v948 = vsub.s32 0, %v947
        %v949 = vrot.slane %v944, %v948
        %v950 = vlaneseq
        %v951 = vshrl.u32 %v950, 7
        %v952 = vsub.s32 1, %v951
        %v953 = vrot.slane %v944, %v952
        %v954 = vlaneseq
        %v955 = vshrl.u32 %v954, 7
        %v956 = vsub.s32 2, %v955
        %v957 = vrot.slane %v944, %v956
        %v993 = vunpack.c.l.b16 %v912
        %v994 = vunpack.c.h.b16 %v912
        %v995 = vunpack.c.l.b16 %v913
        %v996 = vunpack.c.l.b16 %v914
        %v997 = vunpack.c.h.b16 %v914
        %v998 = vunpack.c.l.b16 %v915
        %v999 = vunpack.c.l.b16 %v916
        %v1000 = vunpack.c.h.b16 %v916
        %v1001 = vunpack.c.l.b16 %v917
        %v1002 = vunpack.c.l.b16 %v918
        %v1003 = vunpack.c.h.b16 %v918
        %v1004 = vunpack.c.l.b16 %v919
        %v1005 = vunpack.c.l.b16 %v920
        %v1006 = vunpack.c.h.b16 %v920
        %v1007 = vunpack.c.l.b16 %v921
        %v1008 = vunpack.c.l.b16 %v922
        %v1009 = vunpack.c.h.b16 %v922
        %v1010 = vunpack.c.l.b16 %v923
        %v1011 = vunpack.c.l.b16 %v924
        %v1012 = vunpack.c.h.b16 %v924
        %v1013 = vunpack.c.l.b16 %v925
        %v1014 = vunpack.c.l.b16 %v926
        %v1015 = vunpack.c.h.b16 %v926
        %v1016 = vunpack.c.l.b16 %v927
        %v1017 = vunpack.c.l.b16 %v928
        %v1018 = vunpack.c.h.b16 %v928
        %v1019 = vunpack.c.l.b16 %v929
        %v1020 = vunpack.c.l.b16 %v930
        %v1021 = vunpack.c.h.b16 %v930
        %v1022 = vunpack.c.l.b16 %v931
        %v1023 = vunpack.c.l.b16 %v932
        %v1024 = vunpack.c.h.b16 %v932
        %v1025 = vunpack.c.l.b16 %v933
        %v1026 = vunpack.c.l.b16 %v934
        %v1027 = vunpack.c.h.b16 %v934
        %v1028 = vunpack.c.l.b16 %v935
        %v1029 = vunpack.c.l.b16 %v936
        %v1030 = vunpack.c.h.b16 %v936
        %v1031 = vunpack.c.l.b16 %v937
        %v1032 = vunpack.c.l.b16 %v938
        %v1033 = vunpack.c.h.b16 %v938
        %v1034 = vunpack.c.l.b16 %v939
        %v1035 = vunpack.c.l.b16 %v940
        %v1036 = vunpack.c.h.b16 %v940
        %v1037 = vunpack.c.l.b16 %v941
        %v1038 = vunpack.c.l.b16 %v942
        %v1039 = vunpack.c.h.b16 %v942
        %v1040 = vunpack.c.l.b16 %v943
        %v1041 = vpack.c.b16 %v996, %v993
        %v1042 = vpack.c.b16 %v997, %v994
        %v1043 = vpack.c.b16 %v998, %v995
        %v1044 = vpack.c.b16 %v1002, %v999
        %v1045 = vpack.c.b16 %v1003, %v1000
        %v1046 = vpack.c.b16 %v1004, %v1001
        %v1047 = vpack.c.b16 %v1008, %v1005
        %v1048 = vpack.c.b16 %v1009, %v1006
        %v1049 = vpack.c.b16 %v1010, %v1007
        %v1050 = vpack.c.b16 %v1014, %v1011
        %v1051 = vpack.c.b16 %v1015, %v1012
        %v1052 = vpack.c.b16 %v1016, %v1013
        %v1053 = vpack.c.b16 %v1020, %v1017
        %v1054 = vpack.c.b16 %v1021, %v1018
        %v1055 = vpack.c.b16 %v1022, %v1019
        %v1056 = vpack.c.b16 %v1026, %v1023
        %v1057 = vpack.c.b16 %v1027, %v1024
        %v1058 = vpack.c.b16 %v1028, %v1025
        %v1059 = vpack.c.b16 %v1032, %v1029
        %v1060 = vpack.c.b16 %v1033, %v1030
        %v1061 = vpack.c.b16 %v1034, %v1031
        %v1062 = vpack.c.b16 %v1038, %v1035
        %v1063 = vpack.c.b16 %v1039, %v1036
        %v1064 = vpack.c.b16 %v1040, %v1037
        %1089 = vmatprep.subr.bf16.mxu0 %v1042
        %1090 = vmatpush1.bf16.msra.mxu0 %v1041
        %1091 = vmatprep.subr.bf16.mxu0 %v1045
        %1092 = vmatpush1.bf16.msra.mxu0 %v1044
        %1093 = vmatprep.subr.bf16.mxu0 %v1048
        %1094 = vmatpush1.bf16.msra.mxu0 %v1047
        %1095 = vmatprep.subr.bf16.mxu0 %v1051
        %1096 = vmatpush1.bf16.msra.mxu0 %v1050
        %1097 = vmatprep.subr.bf16.mxu0 %v1054
        %1098 = vmatpush1.bf16.msra.mxu0 %v1053
        %1099 = vmatprep.subr.bf16.mxu0 %v1057
        %1100 = vmatpush1.bf16.msra.mxu0 %v1056
        %1101 = vmatprep.subr.bf16.mxu0 %v1060
        %1102 = vmatpush1.bf16.msra.mxu0 %v1059
        %1103 = vmatprep.subr.bf16.mxu0 %v1063
        %1104 = vmatpush1.bf16.msra.mxu0 %v1062
        %1105 = vmatprep.subr.bf16.mxu0 0
        %1106 = vmatpush1.bf16.msra.mxu0 0
        %1107 = vmatprep.subr.bf16.mxu0 0
        %1108 = vmatpush1.bf16.msra.mxu0 0
        %1109 = vmatprep.subr.bf16.mxu0 0
        %1110 = vmatpush1.bf16.msra.mxu0 0
        %1111 = vmatprep.subr.bf16.mxu0 0
        %1112 = vmatpush1.bf16.msra.mxu0 0
        %1113 = vmatprep.subr.bf16.mxu0 0
        %1114 = vmatpush1.bf16.msra.mxu0 0
        %1115 = vmatprep.subr.bf16.mxu0 0
        %1116 = vmatpush1.bf16.msra.mxu0 0
        %1117 = vmatprep.subr.bf16.mxu0 0
        %1118 = vmatpush1.bf16.msra.mxu0 0
        %1119 = vmatprep.subr.bf16.mxu0 0
        %1120 = vmatpush1.bf16.msra.mxu0 0
        %1121 = vmatprep.mubr.bf16.mxu0 0
        %1122 = vmatmul.mubr.bf16.gmra.mrb[0].mxu0 %v911
        %v1123 = vpop.f32.mrb[0].mxu0
        %v1124 = vadd.f32 %v949, %v1123
        %v1125 = vpop.f32.mrb[0].mxu0
        %v1126 = vadd.f32 %v953, %v1125
        %v1127 = vpop.f32.mrb[0].mxu0
        %v1128 = vadd.f32 %v949, %v1127
        %v1129 = vpop.f32.mrb[0].mxu0
        %v1130 = vadd.f32 %v953, %v1129
        %1131 = vdwg.mxu0
        %1132 = vmatprep.subr.bf16.mxu0 0
        %1133 = vmatpush1.bf16.msra.mxu0 %v1043
        %1134 = vmatprep.subr.bf16.mxu0 0
        %1135 = vmatpush1.bf16.msra.mxu0 %v1046
        %1136 = vmatprep.subr.bf16.mxu0 0
        %1137 = vmatpush1.bf16.msra.mxu0 %v1049
        %1138 = vmatprep.subr.bf16.mxu0 0
        %1139 = vmatpush1.bf16.msra.mxu0 %v1052
        %1140 = vmatprep.subr.bf16.mxu0 0
        %1141 = vmatpush1.bf16.msra.mxu0 %v1055
        %1142 = vmatprep.subr.bf16.mxu0 0
        %1143 = vmatpush1.bf16.msra.mxu0 %v1058
        %1144 = vmatprep.subr.bf16.mxu0 0
        %1145 = vmatpush1.bf16.msra.mxu0 %v1061
        %1146 = vmatprep.subr.bf16.mxu0 0
        %1147 = vmatpush1.bf16.msra.mxu0 %v1064
        %1148 = vmatprep.subr.bf16.mxu0 0
        %1149 = vmatpush1.bf16.msra.mxu0 0
        %1150 = vmatprep.subr.bf16.mxu0 0
        %1151 = vmatpush1.bf16.msra.mxu0 0
        %1152 = vmatprep.subr.bf16.mxu0 0
        %1153 = vmatpush1.bf16.msra.mxu0 0
        %1154 = vmatprep.subr.bf16.mxu0 0
        %1155 = vmatpush1.bf16.msra.mxu0 0
        %1156 = vmatprep.subr.bf16.mxu0 0
        %1157 = vmatpush1.bf16.msra.mxu0 0
        %1158 = vmatprep.subr.bf16.mxu0 0
        %1159 = vmatpush1.bf16.msra.mxu0 0
        %1160 = vmatprep.subr.bf16.mxu0 0
        %1161 = vmatpush1.bf16.msra.mxu0 0
        %1162 = vmatprep.subr.bf16.mxu0 0
        %1163 = vmatpush1.bf16.msra.mxu0 0
        %1164 = vmatprep.mubr.bf16.mxu0 0
        %1165 = vmatmul.mubr.bf16.gmra.mrb[0].mxu0 %v911
        %v1166 = vpop.f32.mrb[0].mxu0
        %v1167 = vadd.f32 %v957, %v1166
        %v1168 = vpop.f32.mrb[0].mxu0
        %v1169 = vpop.f32.mrb[0].mxu0
        %v1170 = vadd.f32 %v957, %v1169
        %v1171 = vpop.f32.mrb[0].mxu0
        %1172 = vdwg.mxu0
        %v1173 = vld [vmem:[#allocation9] sm:$0x1]
        %v1174 = vld [vmem:[#allocation9 + $0x1] sm:$0x1]
        %v1175 = vpack.c.bf16 %v1124, %v1124
        %v1176 = vpack.c.bf16 %v1128, %v1128
        %v1177 = vpack.c.bf16 %v1126, %v1126
        %v1178 = vpack.c.bf16 %v1130, %v1130
        %v1179 = vpack.c.bf16 %v1167, %v1167
        %v1180 = vpack.c.bf16 %v1170, %v1170
        %vm1181 = vcmask 523264
        %v1183 = vsel %vm1181, %v1175, 0
        %v1186 = vsel %vm1181, %v1177, 0
        %1188 = vmatprep.subr.bf16.mxu0 0
        %1189 = vmatpush1.bf16.xpose.msra.mxu0 %v1186
        %1190 = vmatprep.subr.bf16.mxu0 0
        %1191 = vmatpush1.bf16.xpose.msra.mxu0 0
        %1192 = vmatprep.subr.bf16.mxu0 0
        %1193 = vmatpush1.bf16.xpose.msra.mxu0 0
        %1194 = vmatprep.subr.bf16.mxu0 0
        %1195 = vmatpush1.bf16.xpose.msra.mxu0 0
        %1196 = vmatprep.subr.bf16.mxu0 0
        %1197 = vmatpush1.bf16.xpose.msra.mxu0 0
        %1198 = vmatprep.subr.bf16.mxu0 0
        %1199 = vmatpush1.bf16.xpose.msra.mxu0 0
        %1200 = vmatprep.subr.bf16.mxu0 0
        %1201 = vmatpush1.bf16.xpose.msra.mxu0 0
        %1202 = vmatprep.subr.bf16.mxu0 0
        %1203 = vmatpush1.bf16.xpose.msra.mxu0 0
        %1204 = vmatprep.subr.bf16.mxu0 0
        %1205 = vmatpush1.bf16.xpose.msra.mxu0 0
        %1206 = vmatprep.subr.bf16.mxu0 0
        %1207 = vmatpush1.bf16.xpose.msra.mxu0 0
        %1208 = vmatprep.subr.bf16.mxu0 0
        %1209 = vmatpush1.bf16.xpose.msra.mxu0 0
        %1210 = vmatprep.subr.bf16.mxu0 0
        %1211 = vmatpush1.bf16.xpose.msra.mxu0 0
        %1212 = vmatprep.subr.bf16.mxu0 0
        %1213 = vmatpush1.bf16.xpose.msra.mxu0 0
        %1214 = vmatprep.subr.bf16.mxu0 0
        %1215 = vmatpush1.bf16.xpose.msra.mxu0 0
        %1216 = vmatprep.subr.bf16.mxu0 0
        %1217 = vmatpush1.bf16.xpose.msra.mxu0 0
        %1218 = vmatprep.subr.bf16.mxu0 0
        %1219 = vmatpush1.bf16.xpose.msra.mxu0 0
        %1220 = vmatprep.mubr.bf16.mxu0 0
        %1221 = vmatmul.mubr.bf16.gmra.mrb[0].mxu0 %v1183
        %v1222 = vpop.f32.mrb[0].mxu0
        %v1223 = vadd.f32 0.0, %v1222
        %v1224 = vpop.f32.mrb[0].mxu0
        %v1225 = vpop.f32.mrb[0].mxu0
        %v1226 = vpop.f32.mrb[0].mxu0
        %1227 = vdwg.mxu0
        %v1229 = vsel %vm1181, %v1176, 0
        %v1232 = vsel %vm1181, %v1178, 0
        %1234 = vmatprep.subr.bf16.mxu0 0
        %1235 = vmatpush1.bf16.xpose.msra.mxu0 %v1232
        %1236 = vmatprep.subr.bf16.mxu0 0
        %1237 = vmatpush1.bf16.xpose.msra.mxu0 0
        %1238 = vmatprep.subr.bf16.mxu0 0
        %1239 = vmatpush1.bf16.xpose.msra.mxu0 0
        %1240 = vmatprep.subr.bf16.mxu0 0
        %1241 = vmatpush1.bf16.xpose.msra.mxu0 0
        %1242 = vmatprep.subr.bf16.mxu0 0
        %1243 = vmatpush1.bf16.xpose.msra.mxu0 0
        %1244 = vmatprep.subr.bf16.mxu0 0
        %1245 = vmatpush1.bf16.xpose.msra.mxu0 0
        %1246 = vmatprep.subr.bf16.mxu0 0
        %1247 = vmatpush1.bf16.xpose.msra.mxu0 0
        %1248 = vmatprep.subr.bf16.mxu0 0
        %1249 = vmatpush1.bf16.xpose.msra.mxu0 0
        %1250 = vmatprep.subr.bf16.mxu0 0
        %1251 = vmatpush1.bf16.xpose.msra.mxu0 0
        %1252 = vmatprep.subr.bf16.mxu0 0
        %1253 = vmatpush1.bf16.xpose.msra.mxu0 0
        %1254 = vmatprep.subr.bf16.mxu0 0
        %1255 = vmatpush1.bf16.xpose.msra.mxu0 0
        %1256 = vmatprep.subr.bf16.mxu0 0
        %1257 = vmatpush1.bf16.xpose.msra.mxu0 0
        %1258 = vmatprep.subr.bf16.mxu0 0
        %1259 = vmatpush1.bf16.xpose.msra.mxu0 0
        %1260 = vmatprep.subr.bf16.mxu0 0
        %1261 = vmatpush1.bf16.xpose.msra.mxu0 0
        %1262 = vmatprep.subr.bf16.mxu0 0
        %1263 = vmatpush1.bf16.xpose.msra.mxu0 0
        %1264 = vmatprep.subr.bf16.mxu0 0
        %1265 = vmatpush1.bf16.xpose.msra.mxu0 0
        %1266 = vmatprep.mubr.bf16.mxu0 0
        %1267 = vmatmul.mubr.bf16.gmra.mrb[0].mxu0 %v1229
        %v1268 = vpop.f32.mrb[0].mxu0
        %v1269 = vadd.f32 0.0, %v1268
        %v1270 = vpop.f32.mrb[0].mxu0
        %v1271 = vpop.f32.mrb[0].mxu0
        %v1272 = vpop.f32.mrb[0].mxu0
        %1273 = vdwg.mxu0
        %v1274 = vmul.f32 %v1223, 0.125
        %v1275 = vmul.f32 %v1269, 0.125
        %v1278 = vlaneseq
        %v1279 = vshrl.u32 %v1278, 7
        %v1280 = vsub.s32 0, %v1279
        %v1281 = vrot.slane %v1173, %v1280
        %v1282 = vlaneseq
        %v1283 = vshrl.u32 %v1282, 7
        %v1284 = vsub.s32 0, %v1283
        %v1285 = vrot.slane %v1174, %v1284
        %v1288 = vadd.f32 %v1274, %v1281
        %v1289 = vadd.f32 %v1275, %v1285
        %vm1290 = vcmask 64512
        %v1291 = vsel %vm1290, %v1288, -inf
        %1292 = vmax.xlane.f32.xlu0 %v1291
        %v1293 = vpop.xlane.xlu0 %1292
        %v1294 = vsel %vm1290, %v1289, -inf
        %1295 = vmax.xlane.f32.xlu0 %v1294
        %v1296 = vpop.xlane.xlu0 %1295
        %v1297 = vsub.f32 %v1288, %v1293
        %v1298 = vsub.f32 %v1289, %v1296
        %v1299 = vmul.f32 %v1297, 1.442695
        %v1300 = vpow.pop %v1299
        %v1301 = vmul.f32 %v1298, 1.442695
        %v1302 = vpow.pop %v1301
        %v1303 = vsel %vm1290, %v1300, 0.0
        %1304 = vadd.xlane.f32.xlu0 %v1303
        %v1305 = vpop.xlane.xlu0 %1304
        %v1306 = vsel %vm1290, %v1302, 0.0
        %1307 = vadd.xlane.f32.xlu0 %v1306
        %v1308 = vpop.xlane.xlu0 %1307
        %v1309 = vrcp.pop %v1305
        %v1310 = vrcp.pop %v1308
        %v1311 = vmul.f32 %v1300, %v1309
        %v1312 = vmul.f32 %v1302, %v1310
        %v1313 = vpack.c.bf16 %v1311, %v1311
        %v1314 = vpack.c.bf16 %v1312, %v1312
        %v1316 = vsel %vm1290, %v1313, 0
        %vm1318 = vcmask 1043456
        %v1320 = vsel %vm1318, %v1179, 0
        %1322 = vmatprep.subr.bf16.mxu0 0
        %1323 = vmatpush1.bf16.msra.mxu0 %v1320
        %1324 = vmatprep.subr.bf16.mxu0 0
        %1325 = vmatpush1.bf16.msra.mxu0 0
        %1326 = vmatprep.subr.bf16.mxu0 0
        %1327 = vmatpush1.bf16.msra.mxu0 0
        %1328 = vmatprep.subr.bf16.mxu0 0
        %1329 = vmatpush1.bf16.msra.mxu0 0
        %1330 = vmatprep.subr.bf16.mxu0 0
        %1331 = vmatpush1.bf16.msra.mxu0 0
        %1332 = vmatprep.subr.bf16.mxu0 0
        %1333 = vmatpush1.bf16.msra.mxu0 0
        %1334 = vmatprep.subr.bf16.mxu0 0
        %1335 = vmatpush1.bf16.msra.mxu0 0
        %1336 = vmatprep.subr.bf16.mxu0 0
        %1337 = vmatpush1.bf16.msra.mxu0 0
        %1338 = vmatprep.subr.bf16.mxu0 0
        %1339 = vmatpush1.bf16.msra.mxu0 0
        %1340 = vmatprep.subr.bf16.mxu0 0
        %1341 = vmatpush1.bf16.msra.mxu0 0
        %1342 = vmatprep.subr.bf16.mxu0 0
        %1343 = vmatpush1.bf16.msra.mxu0 0
        %1344 = vmatprep.subr.bf16.mxu0 0
        %1345 = vmatpush1.bf16.msra.mxu0 0
        %1346 = vmatprep.subr.bf16.mxu0 0
        %1347 = vmatpush1.bf16.msra.mxu0 0
        %1348 = vmatprep.subr.bf16.mxu0 0
        %1349 = vmatpush1.bf16.msra.mxu0 0
        %1350 = vmatprep.subr.bf16.mxu0 0
        %1351 = vmatpush1.bf16.msra.mxu0 0
        %1352 = vmatprep.subr.bf16.mxu0 0
        %1353 = vmatpush1.bf16.msra.mxu0 0
        %1354 = vmatprep.mubr.bf16.mxu0 0
        %1355 = vmatmul.mubr.bf16.gmra.mrb[0].mxu0 %v1316
        %v1356 = vpop.f32.mrb[0].mxu0
        %v1357 = vadd.f32 0.0, %v1356
        %v1358 = vpop.f32.mrb[0].mxu0
        %v1359 = vpop.f32.mrb[0].mxu0
        %v1360 = vpop.f32.mrb[0].mxu0
        %1361 = vdwg.mxu0
        %v1363 = vsel %vm1290, %v1314, 0
        %v1366 = vsel %vm1318, %v1180, 0
        %1368 = vmatprep.subr.bf16.mxu0 0
        %1369 = vmatpush1.bf16.msra.mxu0 %v1366
        %1370 = vmatprep.subr.bf16.mxu0 0
        %1371 = vmatpush1.bf16.msra.mxu0 0
        %1372 = vmatprep.subr.bf16.mxu0 0
        %1373 = vmatpush1.bf16.msra.mxu0 0
        %1374 = vmatprep.subr.bf16.mxu0 0
        %1375 = vmatpush1.bf16.msra.mxu0 0
        %1376 = vmatprep.subr.bf16.mxu0 0
        %1377 = vmatpush1.bf16.msra.mxu0 0
        %1378 = vmatprep.subr.bf16.mxu0 0
        %1379 = vmatpush1.bf16.msra.mxu0 0
        %1380 = vmatprep.subr.bf16.mxu0 0
        %1381 = vmatpush1.bf16.msra.mxu0 0
        %1382 = vmatprep.subr.bf16.mxu0 0
        %1383 = vmatpush1.bf16.msra.mxu0 0
        %1384 = vmatprep.subr.bf16.mxu0 0
        %1385 = vmatpush1.bf16.msra.mxu0 0
        %1386 = vmatprep.subr.bf16.mxu0 0
        %1387 = vmatpush1.bf16.msra.mxu0 0
        %1388 = vmatprep.subr.bf16.mxu0 0
        %1389 = vmatpush1.bf16.msra.mxu0 0
        %1390 = vmatprep.subr.bf16.mxu0 0
        %1391 = vmatpush1.bf16.msra.mxu0 0
        %1392 = vmatprep.subr.bf16.mxu0 0
        %1393 = vmatpush1.bf16.msra.mxu0 0
        %1394 = vmatprep.subr.bf16.mxu0 0
        %1395 = vmatpush1.bf16.msra.mxu0 0
        %1396 = vmatprep.subr.bf16.mxu0 0
        %1397 = vmatpush1.bf16.msra.mxu0 0
        %1398 = vmatprep.subr.bf16.mxu0 0
        %1399 = vmatpush1.bf16.msra.mxu0 0
        %1400 = vmatprep.mubr.bf16.mxu0 0
        %1401 = vmatmul.mubr.bf16.gmra.mrb[0].mxu0 %v1363
        %v1402 = vpop.f32.mrb[0].mxu0
        %v1403 = vadd.f32 0.0, %v1402
        %v1404 = vpop.f32.mrb[0].mxu0
        %v1405 = vpop.f32.mrb[0].mxu0
        %v1406 = vpop.f32.mrb[0].mxu0
        %1407 = vdwg.mxu0
        %1409 = vrot.lane.b32.xlu0 %v1175, 64
        %v1410 = vpop.permute.xlu0 %1409
        %1412 = vrot.lane.b32.xlu0 %v1177, 64
        %v1413 = vpop.permute.xlu0 %1412
        %v1415 = vsel %vm1181, %v1410, 0
        %v1418 = vsel %vm1181, %v1413, 0
        %1420 = vmatprep.subr.bf16.mxu0 0
        %1421 = vmatpush1.bf16.xpose.msra.mxu0 %v1418
        %1422 = vmatprep.subr.bf16.mxu0 0
        %1423 = vmatpush1.bf16.xpose.msra.mxu0 0
        %1424 = vmatprep.subr.bf16.mxu0 0
        %1425 = vmatpush1.bf16.xpose.msra.mxu0 0
        %1426 = vmatprep.subr.bf16.mxu0 0
        %1427 = vmatpush1.bf16.xpose.msra.mxu0 0
        %1428 = vmatprep.subr.bf16.mxu0 0
        %1429 = vmatpush1.bf16.xpose.msra.mxu0 0
        %1430 = vmatprep.subr.bf16.mxu0 0
        %1431 = vmatpush1.bf16.xpose.msra.mxu0 0
        %1432 = vmatprep.subr.bf16.mxu0 0
        %1433 = vmatpush1.bf16.xpose.msra.mxu0 0
        %1434 = vmatprep.subr.bf16.mxu0 0
        %1435 = vmatpush1.bf16.xpose.msra.mxu0 0
        %1436 = vmatprep.subr.bf16.mxu0 0
        %1437 = vmatpush1.bf16.xpose.msra.mxu0 0
        %1438 = vmatprep.subr.bf16.mxu0 0
        %1439 = vmatpush1.bf16.xpose.msra.mxu0 0
        %1440 = vmatprep.subr.bf16.mxu0 0
        %1441 = vmatpush1.bf16.xpose.msra.mxu0 0
        %1442 = vmatprep.subr.bf16.mxu0 0
        %1443 = vmatpush1.bf16.xpose.msra.mxu0 0
        %1444 = vmatprep.subr.bf16.mxu0 0
        %1445 = vmatpush1.bf16.xpose.msra.mxu0 0
        %1446 = vmatprep.subr.bf16.mxu0 0
        %1447 = vmatpush1.bf16.xpose.msra.mxu0 0
        %1448 = vmatprep.subr.bf16.mxu0 0
        %1449 = vmatpush1.bf16.xpose.msra.mxu0 0
        %1450 = vmatprep.subr.bf16.mxu0 0
        %1451 = vmatpush1.bf16.xpose.msra.mxu0 0
        %1452 = vmatprep.mubr.bf16.mxu0 0
        %1453 = vmatmul.mubr.bf16.gmra.mrb[0].mxu0 %v1415
        %v1454 = vpop.f32.mrb[0].mxu0
        %v1455 = vadd.f32 0.0, %v1454
        %v1456 = vpop.f32.mrb[0].mxu0
        %v1457 = vpop.f32.mrb[0].mxu0
        %v1458 = vpop.f32.mrb[0].mxu0
        %1459 = vdwg.mxu0
        %1461 = vrot.lane.b32.xlu0 %v1176, 64
        %v1462 = vpop.permute.xlu0 %1461
        %1464 = vrot.lane.b32.xlu0 %v1178, 64
        %v1465 = vpop.permute.xlu0 %1464
        %v1467 = vsel %vm1181, %v1462, 0
        %v1470 = vsel %vm1181, %v1465, 0
        %1472 = vmatprep.subr.bf16.mxu0 0
        %1473 = vmatpush1.bf16.xpose.msra.mxu0 %v1470
        %1474 = vmatprep.subr.bf16.mxu0 0
        %1475 = vmatpush1.bf16.xpose.msra.mxu0 0
        %1476 = vmatprep.subr.bf16.mxu0 0
        %1477 = vmatpush1.bf16.xpose.msra.mxu0 0
        %1478 = vmatprep.subr.bf16.mxu0 0
        %1479 = vmatpush1.bf16.xpose.msra.mxu0 0
        %1480 = vmatprep.subr.bf16.mxu0 0
        %1481 = vmatpush1.bf16.xpose.msra.mxu0 0
        %1482 = vmatprep.subr.bf16.mxu0 0
        %1483 = vmatpush1.bf16.xpose.msra.mxu0 0
        %1484 = vmatprep.subr.bf16.mxu0 0
        %1485 = vmatpush1.bf16.xpose.msra.mxu0 0
        %1486 = vmatprep.subr.bf16.mxu0 0
        %1487 = vmatpush1.bf16.xpose.msra.mxu0 0
        %1488 = vmatprep.subr.bf16.mxu0 0
        %1489 = vmatpush1.bf16.xpose.msra.mxu0 0
        %1490 = vmatprep.subr.bf16.mxu0 0
        %1491 = vmatpush1.bf16.xpose.msra.mxu0 0
        %1492 = vmatprep.subr.bf16.mxu0 0
        %1493 = vmatpush1.bf16.xpose.msra.mxu0 0
        %1494 = vmatprep.subr.bf16.mxu0 0
        %1495 = vmatpush1.bf16.xpose.msra.mxu0 0
        %1496 = vmatprep.subr.bf16.mxu0 0
        %1497 = vmatpush1.bf16.xpose.msra.mxu0 0
        %1498 = vmatprep.subr.bf16.mxu0 0
        %1499 = vmatpush1.bf16.xpose.msra.mxu0 0
        %1500 = vmatprep.subr.bf16.mxu0 0
        %1501 = vmatpush1.bf16.xpose.msra.mxu0 0
        %1502 = vmatprep.subr.bf16.mxu0 0
        %1503 = vmatpush1.bf16.xpose.msra.mxu0 0
        %1504 = vmatprep.mubr.bf16.mxu0 0
        %1505 = vmatmul.mubr.bf16.gmra.mrb[0].mxu0 %v1467
        %v1506 = vpop.f32.mrb[0].mxu0
        %v1507 = vadd.f32 0.0, %v1506
        %v1508 = vpop.f32.mrb[0].mxu0
        %v1509 = vpop.f32.mrb[0].mxu0
        %v1510 = vpop.f32.mrb[0].mxu0
        %1511 = vdwg.mxu0
        %v1512 = vmul.f32 %v1455, 0.125
        %v1513 = vmul.f32 %v1507, 0.125
        %v1514 = vadd.f32 %v1512, %v1281
        %v1515 = vadd.f32 %v1513, %v1285
        %v1516 = vsel %vm1290, %v1514, -inf
        %1517 = vmax.xlane.f32.xlu0 %v1516
        %v1518 = vpop.xlane.xlu0 %1517
        %v1519 = vsel %vm1290, %v1515, -inf
        %1520 = vmax.xlane.f32.xlu0 %v1519
        %v1521 = vpop.xlane.xlu0 %1520
        %v1522 = vsub.f32 %v1514, %v1518
        %v1523 = vsub.f32 %v1515, %v1521
        %v1524 = vmul.f32 %v1522, 1.442695
        %v1525 = vpow.pop %v1524
        %v1526 = vmul.f32 %v1523, 1.442695
        %v1527 = vpow.pop %v1526
        %v1528 = vsel %vm1290, %v1525, 0.0
        %1529 = vadd.xlane.f32.xlu0 %v1528
        %v1530 = vpop.xlane.xlu0 %1529
        %v1531 = vsel %vm1290, %v1527, 0.0
        %1532 = vadd.xlane.f32.xlu0 %v1531
        %v1533 = vpop.xlane.xlu0 %1532
        %v1534 = vrcp.pop %v1530
        %v1535 = vrcp.pop %v1533
        %v1536 = vmul.f32 %v1525, %v1534
        %v1537 = vmul.f32 %v1527, %v1535
        %v1538 = vpack.c.bf16 %v1536, %v1536
        %v1539 = vpack.c.bf16 %v1537, %v1537
        %1541 = vrot.lane.b32.xlu0 %v1179, 64
        %v1542 = vpop.permute.xlu0 %1541
        %v1544 = vsel %vm1290, %v1538, 0
        %v1547 = vsel %vm1318, %v1542, 0
        %1549 = vmatprep.subr.bf16.mxu0 0
        %1550 = vmatpush1.bf16.msra.mxu0 %v1547
        %1551 = vmatprep.subr.bf16.mxu0 0
        %1552 = vmatpush1.bf16.msra.mxu0 0
        %1553 = vmatprep.subr.bf16.mxu0 0
        %1554 = vmatpush1.bf16.msra.mxu0 0
        %1555 = vmatprep.subr.bf16.mxu0 0
        %1556 = vmatpush1.bf16.msra.mxu0 0
        %1557 = vmatprep.subr.bf16.mxu0 0
        %1558 = vmatpush1.bf16.msra.mxu0 0
        %1559 = vmatprep.subr.bf16.mxu0 0
        %1560 = vmatpush1.bf16.msra.mxu0 0
        %1561 = vmatprep.subr.bf16.mxu0 0
        %1562 = vmatpush1.bf16.msra.mxu0 0
        %1563 = vmatprep.subr.bf16.mxu0 0
        %1564 = vmatpush1.bf16.msra.mxu0 0
        %1565 = vmatprep.subr.bf16.mxu0 0
        %1566 = vmatpush1.bf16.msra.mxu0 0
        %1567 = vmatprep.subr.bf16.mxu0 0
        %1568 = vmatpush1.bf16.msra.mxu0 0
        %1569 = vmatprep.subr.bf16.mxu0 0
        %1570 = vmatpush1.bf16.msra.mxu0 0
        %1571 = vmatprep.subr.bf16.mxu0 0
        %1572 = vmatpush1.bf16.msra.mxu0 0
        %1573 = vmatprep.subr.bf16.mxu0 0
        %1574 = vmatpush1.bf16.msra.mxu0 0
        %1575 = vmatprep.subr.bf16.mxu0 0
        %1576 = vmatpush1.bf16.msra.mxu0 0
        %1577 = vmatprep.subr.bf16.mxu0 0
        %1578 = vmatpush1.bf16.msra.mxu0 0
        %1579 = vmatprep.subr.bf16.mxu0 0
        %1580 = vmatpush1.bf16.msra.mxu0 0
        %1581 = vmatprep.mubr.bf16.mxu0 0
        %1582 = vmatmul.mubr.bf16.gmra.mrb[0].mxu0 %v1544
        %v1583 = vpop.f32.mrb[0].mxu0
        %v1584 = vadd.f32 0.0, %v1583
        %v1585 = vpop.f32.mrb[0].mxu0
        %v1586 = vpop.f32.mrb[0].mxu0
        %v1587 = vpop.f32.mrb[0].mxu0
        %1588 = vdwg.mxu0
        %1590 = vrot.lane.b32.xlu0 %v1180, 64
        %v1591 = vpop.permute.xlu0 %1590
        %v1593 = vsel %vm1290, %v1539, 0
        %v1596 = vsel %vm1318, %v1591, 0
        %1598 = vmatprep.subr.bf16.mxu0 0
        %1599 = vmatpush1.bf16.msra.mxu0 %v1596
        %1600 = vmatprep.subr.bf16.mxu0 0
        %1601 = vmatpush1.bf16.msra.mxu0 0
        %1602 = vmatprep.subr.bf16.mxu0 0
        %1603 = vmatpush1.bf16.msra.mxu0 0
        %1604 = vmatprep.subr.bf16.mxu0 0
        %1605 = vmatpush1.bf16.msra.mxu0 0
        %1606 = vmatprep.subr.bf16.mxu0 0
        %1607 = vmatpush1.bf16.msra.mxu0 0
        %1608 = vmatprep.subr.bf16.mxu0 0
        %1609 = vmatpush1.bf16.msra.mxu0 0
        %1610 = vmatprep.subr.bf16.mxu0 0
        %1611 = vmatpush1.bf16.msra.mxu0 0
        %1612 = vmatprep.subr.bf16.mxu0 0
        %1613 = vmatpush1.bf16.msra.mxu0 0
        %1614 = vmatprep.subr.bf16.mxu0 0
        %1615 = vmatpush1.bf16.msra.mxu0 0
        %1616 = vmatprep.subr.bf16.mxu0 0
        %1617 = vmatpush1.bf16.msra.mxu0 0
        %1618 = vmatprep.subr.bf16.mxu0 0
        %1619 = vmatpush1.bf16.msra.mxu0 0
        %1620 = vmatprep.subr.bf16.mxu0 0
        %1621 = vmatpush1.bf16.msra.mxu0 0
        %1622 = vmatprep.subr.bf16.mxu0 0
        %1623 = vmatpush1.bf16.msra.mxu0 0
        %1624 = vmatprep.subr.bf16.mxu0 0
        %1625 = vmatpush1.bf16.msra.mxu0 0
        %1626 = vmatprep.subr.bf16.mxu0 0
        %1627 = vmatpush1.bf16.msra.mxu0 0
        %1628 = vmatprep.subr.bf16.mxu0 0
        %1629 = vmatpush1.bf16.msra.mxu0 0
        %1630 = vmatprep.mubr.bf16.mxu0 0
        %1631 = vmatmul.mubr.bf16.gmra.mrb[0].mxu0 %v1593
        %v1632 = vpop.f32.mrb[0].mxu0
        %v1633 = vadd.f32 0.0, %v1632
        %v1634 = vpop.f32.mrb[0].mxu0
        %v1635 = vpop.f32.mrb[0].mxu0
        %v1636 = vpop.f32.mrb[0].mxu0
        %1637 = vdwg.mxu0
        %1640 = vrot.lane.b32.xlu0 %v1584, 64
        %v1641 = vpop.permute.xlu0 %1640
        %1642 = vrot.lane.b32.xlu0 %v1633, 64
        %v1643 = vpop.permute.xlu0 %1642
        %v1646 = vsel %vm1181, %v1357, %v1641
        %v1647 = vsel %vm1181, %v1403, %v1643
        %v1648 = vpack.c.bf16 %v1647, %v1646
        %v1649 = vld [vmem:[%s726] sm:$0xf]
        %v1650 = vld [vmem:[%s726 + $0x4] sm:$0xf]
        %v1651 = vld [vmem:[%s726 + $0x8] sm:$0xf]
        %v1652 = vld [vmem:[%s726 + $0xc] sm:$0xf]
        %v1653 = vld [vmem:[%s726 + $0x10] sm:$0xf]
        %v1654 = vld [vmem:[%s726 + $0x14] sm:$0xf]
        %v1655 = vld [vmem:[%s726 + $0x18] sm:$0xf]
        %v1656 = vld [vmem:[%s726 + $0x1c] sm:$0xf]
        %v1657 = vld [vmem:[%s726 + $0x20] sm:$0xf]
        %v1658 = vld [vmem:[%s726 + $0x24] sm:$0xf]
        %v1659 = vld [vmem:[%s726 + $0x28] sm:$0xf]
        %v1660 = vld [vmem:[%s726 + $0x2c] sm:$0xf]
        %v1661 = vld [vmem:[%s726 + $0x30] sm:$0xf]
        %v1662 = vld [vmem:[%s726 + $0x34] sm:$0xf]
        %v1663 = vld [vmem:[%s726 + $0x38] sm:$0xf]
        %v1664 = vld [vmem:[%s726 + $0x3c] sm:$0xf]
        %v1665 = vld [vmem:[%s839] sm:$0x1]
        %v1667 = vlaneseq
        %v1668 = vshrl.u32 %v1667, 7
        %v1669 = vsub.s32 0, %v1668
        %v1670 = vrot.slane %v1665, %v1669
        %v1688 = vunpack.c.l.b16 %v1649
        %v1689 = vunpack.c.l.b16 %v1650
        %v1690 = vunpack.c.l.b16 %v1651
        %v1691 = vunpack.c.l.b16 %v1652
        %v1692 = vunpack.c.l.b16 %v1653
        %v1693 = vunpack.c.l.b16 %v1654
        %v1694 = vunpack.c.l.b16 %v1655
        %v1695 = vunpack.c.l.b16 %v1656
        %v1696 = vunpack.c.l.b16 %v1657
        %v1697 = vunpack.c.l.b16 %v1658
        %v1698 = vunpack.c.l.b16 %v1659
        %v1699 = vunpack.c.l.b16 %v1660
        %v1700 = vunpack.c.l.b16 %v1661
        %v1701 = vunpack.c.l.b16 %v1662
        %v1702 = vunpack.c.l.b16 %v1663
        %v1703 = vunpack.c.l.b16 %v1664
        %v1704 = vpack.c.b16 %v1689, %v1688
        %v1705 = vpack.c.b16 %v1691, %v1690
        %v1706 = vpack.c.b16 %v1693, %v1692
        %v1707 = vpack.c.b16 %v1695, %v1694
        %v1708 = vpack.c.b16 %v1697, %v1696
        %v1709 = vpack.c.b16 %v1699, %v1698
        %v1710 = vpack.c.b16 %v1701, %v1700
        %v1711 = vpack.c.b16 %v1703, %v1702
        %1720 = vmatprep.subr.bf16.mxu0 0
        %1721 = vmatpush1.bf16.msra.mxu0 %v1704
        %1722 = vmatprep.subr.bf16.mxu0 0
        %1723 = vmatpush1.bf16.msra.mxu0 %v1705
        %1724 = vmatprep.subr.bf16.mxu0 0
        %1725 = vmatpush1.bf16.msra.mxu0 %v1706
        %1726 = vmatprep.subr.bf16.mxu0 0
        %1727 = vmatpush1.bf16.msra.mxu0 %v1707
        %1728 = vmatprep.subr.bf16.mxu0 0
        %1729 = vmatpush1.bf16.msra.mxu0 %v1708
        %1730 = vmatprep.subr.bf16.mxu0 0
        %1731 = vmatpush1.bf16.msra.mxu0 %v1709
        %1732 = vmatprep.subr.bf16.mxu0 0
        %1733 = vmatpush1.bf16.msra.mxu0 %v1710
        %1734 = vmatprep.subr.bf16.mxu0 0
        %1735 = vmatpush1.bf16.msra.mxu0 %v1711
        %1736 = vmatprep.subr.bf16.mxu0 0
        %1737 = vmatpush1.bf16.msra.mxu0 0
        %1738 = vmatprep.subr.bf16.mxu0 0
        %1739 = vmatpush1.bf16.msra.mxu0 0
        %1740 = vmatprep.subr.bf16.mxu0 0
        %1741 = vmatpush1.bf16.msra.mxu0 0
        %1742 = vmatprep.subr.bf16.mxu0 0
        %1743 = vmatpush1.bf16.msra.mxu0 0
        %1744 = vmatprep.subr.bf16.mxu0 0
        %1745 = vmatpush1.bf16.msra.mxu0 0
        %1746 = vmatprep.subr.bf16.mxu0 0
        %1747 = vmatpush1.bf16.msra.mxu0 0
        %1748 = vmatprep.subr.bf16.mxu0 0
        %1749 = vmatpush1.bf16.msra.mxu0 0
        %1750 = vmatprep.subr.bf16.mxu0 0
        %1751 = vmatpush1.bf16.msra.mxu0 0
        %1752 = vmatprep.mubr.bf16.mxu0 0
        %1753 = vmatmul.mubr.bf16.gmra.mrb[0].mxu0 %v1648
        %v1754 = vpop.f32.mrb[0].mxu0
        %v1755 = vadd.f32 %v1670, %v1754
        %v1756 = vpop.f32.mrb[0].mxu0
        %v1757 = vpop.f32.mrb[0].mxu0
        %v1758 = vadd.f32 %v1670, %v1757
        %v1759 = vpop.f32.mrb[0].mxu0
        %1760 = vdwg.mxu0
        %v1761 = vadd.f32 %v1755, %v909
        %v1762 = vadd.f32 %v1758, %v910
        %v1763 = vld [vmem:[%s849] sm:$0x1]
        %v1764 = vld [vmem:[%s852] sm:$0x1]
        %1765 = vadd.xlane.f32.xlu0 %v1761
        %v1766 = vpop.xlane.xlu0 %1765
        %1767 = vadd.xlane.f32.xlu0 %v1762
        %v1768 = vpop.xlane.xlu0 %1767
        %v1769 = vrcp.pop 128.0
        %v1770 = vmul.f32 %v1766, %v1769
        %v1771 = vmul.f32 %v1768, %v1769
        %v1772 = vsub.f32 %v1761, %v1770
        %v1773 = vsub.f32 %v1762, %v1771
        %v1774 = vmul.f32 %v1772, %v1772
        %v1775 = vmul.f32 %v1773, %v1773
        %1776 = vadd.xlane.f32.xlu0 %v1774
        %v1777 = vpop.xlane.xlu0 %1776
        %1778 = vadd.xlane.f32.xlu0 %v1775
        %v1779 = vpop.xlane.xlu0 %1778
        %v1780 = vmul.f32 %v1777, %v1769
        %v1781 = vmul.f32 %v1779, %v1769
        %v1782 = vadd.f32 %v1780, 1e-12
        %v1783 = vadd.f32 %v1781, 1e-12
        %v1784 = vrsqrt.pop %v1782
        %v1785 = vrsqrt.pop %v1783
        %v1786 = vmul.f32 %v1772, %v1784
        %v1787 = vmul.f32 %v1773, %v1785
        %v1789 = vlaneseq
        %v1790 = vshrl.u32 %v1789, 7
        %v1791 = vsub.s32 0, %v1790
        %v1792 = vrot.slane %v1763, %v1791
        %v1794 = vmul.f32 %v1786, %v1792
        %v1795 = vmul.f32 %v1787, %v1792
        %v1797 = vlaneseq
        %v1798 = vshrl.u32 %v1797, 7
        %v1799 = vsub.s32 0, %v1798
        %v1800 = vrot.slane %v1764, %v1799
        %v1802 = vadd.f32 %v1794, %v1800
        %v1803 = vadd.f32 %v1795, %v1800
        %v1804 = vpack.c.bf16 %v1803, %v1802
        %v1805 = vld [vmem:[%s735] sm:$0xff]
        %v1806 = vld [vmem:[%s735 + $0x8] sm:$0xff]
        %v1807 = vld [vmem:[%s735 + $0x10] sm:$0xff]
        %v1808 = vld [vmem:[%s735 + $0x18] sm:$0xff]
        %v1809 = vld [vmem:[%s735 + $0x20] sm:$0xff]
        %v1810 = vld [vmem:[%s735 + $0x28] sm:$0xff]
        %v1811 = vld [vmem:[%s735 + $0x30] sm:$0xff]
        %v1812 = vld [vmem:[%s735 + $0x38] sm:$0xff]
        %v1813 = vld [vmem:[%s735 + $0x40] sm:$0xff]
        %v1814 = vld [vmem:[%s735 + $0x48] sm:$0xff]
        %v1815 = vld [vmem:[%s735 + $0x50] sm:$0xff]
        %v1816 = vld [vmem:[%s735 + $0x58] sm:$0xff]
        %v1817 = vld [vmem:[%s735 + $0x60] sm:$0xff]
        %v1818 = vld [vmem:[%s735 + $0x68] sm:$0xff]
        %v1819 = vld [vmem:[%s735 + $0x70] sm:$0xff]
        %v1820 = vld [vmem:[%s735 + $0x78] sm:$0xff]
        %v1821 = vld [vmem:[%s843] sm:$0x3]
        %v1823 = vlaneseq
        %v1824 = vshrl.u32 %v1823, 7
        %v1825 = vsub.s32 0, %v1824
        %v1826 = vrot.slane %v1821, %v1825
        %v1827 = vlaneseq
        %v1828 = vshrl.u32 %v1827, 7
        %v1829 = vsub.s32 1, %v1828
        %v1830 = vrot.slane %v1821, %v1829
        %v1849 = vunpack.c.l.b16 %v1805
        %v1850 = vunpack.c.h.b16 %v1805
        %v1851 = vunpack.c.l.b16 %v1806
        %v1852 = vunpack.c.h.b16 %v1806
        %v1853 = vunpack.c.l.b16 %v1807
        %v1854 = vunpack.c.h.b16 %v1807
        %v1855 = vunpack.c.l.b16 %v1808
        %v1856 = vunpack.c.h.b16 %v1808
        %v1857 = vunpack.c.l.b16 %v1809
        %v1858 = vunpack.c.h.b16 %v1809
        %v1859 = vunpack.c.l.b16 %v1810
        %v1860 = vunpack.c.h.b16 %v1810
        %v1861 = vunpack.c.l.b16 %v1811
        %v1862 = vunpack.c.h.b16 %v1811
        %v1863 = vunpack.c.l.b16 %v1812
        %v1864 = vunpack.c.h.b16 %v1812
        %v1865 = vunpack.c.l.b16 %v1813
        %v1866 = vunpack.c.h.b16 %v1813
        %v1867 = vunpack.c.l.b16 %v1814
        %v1868 = vunpack.c.h.b16 %v1814
        %v1869 = vunpack.c.l.b16 %v1815
        %v1870 = vunpack.c.h.b16 %v1815
        %v1871 = vunpack.c.l.b16 %v1816
        %v1872 = vunpack.c.h.b16 %v1816
        %v1873 = vunpack.c.l.b16 %v1817
        %v1874 = vunpack.c.h.b16 %v1817
        %v1875 = vunpack.c.l.b16 %v1818
        %v1876 = vunpack.c.h.b16 %v1818
        %v1877 = vunpack.c.l.b16 %v1819
        %v1878 = vunpack.c.h.b16 %v1819
        %v1879 = vunpack.c.l.b16 %v1820
        %v1880 = vunpack.c.h.b16 %v1820
        %v1881 = vpack.c.b16 %v1851, %v1849
        %v1882 = vpack.c.b16 %v1852, %v1850
        %v1883 = vpack.c.b16 %v1855, %v1853
        %v1884 = vpack.c.b16 %v1856, %v1854
        %v1885 = vpack.c.b16 %v1859, %v1857
        %v1886 = vpack.c.b16 %v1860, %v1858
        %v1887 = vpack.c.b16 %v1863, %v1861
        %v1888 = vpack.c.b16 %v1864, %v1862
        %v1889 = vpack.c.b16 %v1867, %v1865
        %v1890 = vpack.c.b16 %v1868, %v1866
        %v1891 = vpack.c.b16 %v1871, %v1869
        %v1892 = vpack.c.b16 %v1872, %v1870
        %v1893 = vpack.c.b16 %v1875, %v1873
        %v1894 = vpack.c.b16 %v1876, %v1874
        %v1895 = vpack.c.b16 %v1879, %v1877
        %v1896 = vpack.c.b16 %v1880, %v1878
        %1913 = vmatprep.subr.bf16.mxu0 %v1882
        %1914 = vmatpush1.bf16.msra.mxu0 %v1881
        %1915 = vmatprep.subr.bf16.mxu0 %v1884
        %1916 = vmatpush1.bf16.msra.mxu0 %v1883
        %1917 = vmatprep.subr.bf16.mxu0 %v1886
        %1918 = vmatpush1.bf16.msra.mxu0 %v1885
        %1919 = vmatprep.subr.bf16.mxu0 %v1888
        %1920 = vmatpush1.bf16.msra.mxu0 %v1887
        %1921 = vmatprep.subr.bf16.mxu0 %v1890
        %1922 = vmatpush1.bf16.msra.mxu0 %v1889
        %1923 = vmatprep.subr.bf16.mxu0 %v1892
        %1924 = vmatpush1.bf16.msra.mxu0 %v1891
        %1925 = vmatprep.subr.bf16.mxu0 %v1894
        %1926 = vmatpush1.bf16.msra.mxu0 %v1893
        %1927 = vmatprep.subr.bf16.mxu0 %v1896
        %1928 = vmatpush1.bf16.msra.mxu0 %v1895
        %1929 = vmatprep.subr.bf16.mxu0 0
        %1930 = vmatpush1.bf16.msra.mxu0 0
        %1931 = vmatprep.subr.bf16.mxu0 0
        %1932 = vmatpush1.bf16.msra.mxu0 0
        %1933 = vmatprep.subr.bf16.mxu0 0
        %1934 = vmatpush1.bf16.msra.mxu0 0
        %1935 = vmatprep.subr.bf16.mxu0 0
        %1936 = vmatpush1.bf16.msra.mxu0 0
        %1937 = vmatprep.subr.bf16.mxu0 0
        %1938 = vmatpush1.bf16.msra.mxu0 0
        %1939 = vmatprep.subr.bf16.mxu0 0
        %1940 = vmatpush1.bf16.msra.mxu0 0
        %1941 = vmatprep.subr.bf16.mxu0 0
        %1942 = vmatpush1.bf16.msra.mxu0 0
        %1943 = vmatprep.subr.bf16.mxu0 0
        %1944 = vmatpush1.bf16.msra.mxu0 0
        %1945 = vmatprep.mubr.bf16.mxu0 0
        %1946 = vmatmul.mubr.bf16.gmra.mrb[0].mxu0 %v1804
        %v1947 = vpop.f32.mrb[0].mxu0
        %v1948 = vadd.f32 %v1826, %v1947
        %v1949 = vpop.f32.mrb[0].mxu0
        %v1950 = vadd.f32 %v1830, %v1949
        %v1951 = vpop.f32.mrb[0].mxu0
        %v1952 = vadd.f32 %v1826, %v1951
        %v1953 = vpop.f32.mrb[0].mxu0
        %v1954 = vadd.f32 %v1830, %v1953
        %1955 = vdwg.mxu0
        %v1956 = vmul.f32 %v1948, 0.5
        %v1957 = vmul.f32 %v1950, 0.5
        %v1958 = vmul.f32 %v1952, 0.5
        %v1959 = vmul.f32 %v1954, 0.5
        %v1960 = vmul.f32 %v1948, 0.044715
        %v1961 = vmul.f32 %v1950, 0.044715
        %v1962 = vmul.f32 %v1952, 0.044715
        %v1963 = vmul.f32 %v1954, 0.044715
        %v1964 = vmul.f32 %v1960, %v1948
        %v1965 = vmul.f32 %v1961, %v1950
        %v1966 = vmul.f32 %v1962, %v1952
        %v1967 = vmul.f32 %v1963, %v1954
        %v1968 = vmul.f32 %v1964, %v1948
        %v1969 = vmul.f32 %v1965, %v1950
        %v1970 = vmul.f32 %v1966, %v1952
        %v1971 = vmul.f32 %v1967, %v1954
        %v1972 = vadd.f32 %v1948, %v1968
        %v1973 = vadd.f32 %v1950, %v1969
        %v1974 = vadd.f32 %v1952, %v1970
        %v1975 = vadd.f32 %v1954, %v1971
        %v1976 = vmul.f32 %v1972, 0.7978846
        %v1977 = vmul.f32 %v1973, 0.7978846
        %v1978 = vmul.f32 %v1974, 0.7978846
        %v1979 = vmul.f32 %v1975, 0.7978846
        %v1980 = vtanh.pop %v1976
        %v1981 = vtanh.pop %v1977
        %v1982 = vtanh.pop %v1978
        %v1983 = vtanh.pop %v1979
        %v1984 = vadd.f32 %v1980, 1.0
        %v1985 = vadd.f32 %v1981, 1.0
        %v1986 = vadd.f32 %v1982, 1.0
        %v1987 = vadd.f32 %v1983, 1.0
        %v1988 = vmul.f32 %v1956, %v1984
        %v1989 = vmul.f32 %v1957, %v1985
        %v1990 = vmul.f32 %v1958, %v1986
        %v1991 = vmul.f32 %v1959, %v1987
        %v1992 = vpack.c.bf16 %v1990, %v1988
        %v1993 = vpack.c.bf16 %v1991, %v1989
        %v1994 = vld [vmem:[%s744] sm:$0xf]
        %v1995 = vld [vmem:[%s744 + $0x4] sm:$0xf]
        %v1996 = vld [vmem:[%s744 + $0x8] sm:$0xf]
        %v1997 = vld [vmem:[%s744 + $0xc] sm:$0xf]
        %v1998 = vld [vmem:[%s744 + $0x10] sm:$0xf]
        %v1999 = vld [vmem:[%s744 + $0x14] sm:$0xf]
        %v2000 = vld [vmem:[%s744 + $0x18] sm:$0xf]
        %v2001 = vld [vmem:[%s744 + $0x1c] sm:$0xf]
        %v2002 = vld [vmem:[%s744 + $0x20] sm:$0xf]
        %v2003 = vld [vmem:[%s744 + $0x24] sm:$0xf]
        %v2004 = vld [vmem:[%s744 + $0x28] sm:$0xf]
        %v2005 = vld [vmem:[%s744 + $0x2c] sm:$0xf]
        %v2006 = vld [vmem:[%s744 + $0x30] sm:$0xf]
        %v2007 = vld [vmem:[%s744 + $0x34] sm:$0xf]
        %v2008 = vld [vmem:[%s744 + $0x38] sm:$0xf]
        %v2009 = vld [vmem:[%s744 + $0x3c] sm:$0xf]
        %v2010 = vld [vmem:[%s744 + $0x40] sm:$0xf]
        %v2011 = vld [vmem:[%s744 + $0x44] sm:$0xf]
        %v2012 = vld [vmem:[%s744 + $0x48] sm:$0xf]
        %v2013 = vld [vmem:[%s744 + $0x4c] sm:$0xf]
        %v2014 = vld [vmem:[%s744 + $0x50] sm:$0xf]
        %v2015 = vld [vmem:[%s744 + $0x54] sm:$0xf]
        %v2016 = vld [vmem:[%s744 + $0x58] sm:$0xf]
        %v2017 = vld [vmem:[%s744 + $0x5c] sm:$0xf]
        %v2018 = vld [vmem:[%s744 + $0x60] sm:$0xf]
        %v2019 = vld [vmem:[%s744 + $0x64] sm:$0xf]
        %v2020 = vld [vmem:[%s744 + $0x68] sm:$0xf]
        %v2021 = vld [vmem:[%s744 + $0x6c] sm:$0xf]
        %v2022 = vld [vmem:[%s744 + $0x70] sm:$0xf]
        %v2023 = vld [vmem:[%s744 + $0x74] sm:$0xf]
        %v2024 = vld [vmem:[%s744 + $0x78] sm:$0xf]
        %v2025 = vld [vmem:[%s744 + $0x7c] sm:$0xf]
        %v2026 = vld [vmem:[%s846] sm:$0x1]
        %v2028 = vlaneseq
        %v2029 = vshrl.u32 %v2028, 7
        %v2030 = vsub.s32 0, %v2029
        %v2031 = vrot.slane %v2026, %v2030
        %v2065 = vunpack.c.l.b16 %v1994
        %v2066 = vunpack.c.l.b16 %v1995
        %v2067 = vunpack.c.l.b16 %v1996
        %v2068 = vunpack.c.l.b16 %v1997
        %v2069 = vunpack.c.l.b16 %v1998
        %v2070 = vunpack.c.l.b16 %v1999
        %v2071 = vunpack.c.l.b16 %v2000
        %v2072 = vunpack.c.l.b16 %v2001
        %v2073 = vunpack.c.l.b16 %v2002
        %v2074 = vunpack.c.l.b16 %v2003
        %v2075 = vunpack.c.l.b16 %v2004
        %v2076 = vunpack.c.l.b16 %v2005
        %v2077 = vunpack.c.l.b16 %v2006
        %v2078 = vunpack.c.l.b16 %v2007
        %v2079 = vunpack.c.l.b16 %v2008
        %v2080 = vunpack.c.l.b16 %v2009
        %v2081 = vunpack.c.l.b16 %v2010
        %v2082 = vunpack.c.l.b16 %v2011
        %v2083 = vunpack.c.l.b16 %v2012
        %v2084 = vunpack.c.l.b16 %v2013
        %v2085 = vunpack.c.l.b16 %v2014
        %v2086 = vunpack.c.l.b16 %v2015
        %v2087 = vunpack.c.l.b16 %v2016
        %v2088 = vunpack.c.l.b16 %v2017
        %v2089 = vunpack.c.l.b16 %v2018
        %v2090 = vunpack.c.l.b16 %v2019
        %v2091 = vunpack.c.l.b16 %v2020
        %v2092 = vunpack.c.l.b16 %v2021
        %v2093 = vunpack.c.l.b16 %v2022
        %v2094 = vunpack.c.l.b16 %v2023
        %v2095 = vunpack.c.l.b16 %v2024
        %v2096 = vunpack.c.l.b16 %v2025
        %v2097 = vpack.c.b16 %v2066, %v2065
        %v2098 = vpack.c.b16 %v2068, %v2067
        %v2099 = vpack.c.b16 %v2070, %v2069
        %v2100 = vpack.c.b16 %v2072, %v2071
        %v2101 = vpack.c.b16 %v2074, %v2073
        %v2102 = vpack.c.b16 %v2076, %v2075
        %v2103 = vpack.c.b16 %v2078, %v2077
        %v2104 = vpack.c.b16 %v2080, %v2079
        %v2105 = vpack.c.b16 %v2082, %v2081
        %v2106 = vpack.c.b16 %v2084, %v2083
        %v2107 = vpack.c.b16 %v2086, %v2085
        %v2108 = vpack.c.b16 %v2088, %v2087
        %v2109 = vpack.c.b16 %v2090, %v2089
        %v2110 = vpack.c.b16 %v2092, %v2091
        %v2111 = vpack.c.b16 %v2094, %v2093
        %v2112 = vpack.c.b16 %v2096, %v2095
        %2129 = vmatprep.subr.bf16.mxu0 0
        %2130 = vmatpush1.bf16.msra.mxu0 %v2097
        %2131 = vmatprep.subr.bf16.mxu0 0
        %2132 = vmatpush1.bf16.msra.mxu0 %v2098
        %2133 = vmatprep.subr.bf16.mxu0 0
        %2134 = vmatpush1.bf16.msra.mxu0 %v2099
        %2135 = vmatprep.subr.bf16.mxu0 0
        %2136 = vmatpush1.bf16.msra.mxu0 %v2100
        %2137 = vmatprep.subr.bf16.mxu0 0
        %2138 = vmatpush1.bf16.msra.mxu0 %v2101
        %2139 = vmatprep.subr.bf16.mxu0 0
        %2140 = vmatpush1.bf16.msra.mxu0 %v2102
        %2141 = vmatprep.subr.bf16.mxu0 0
        %2142 = vmatpush1.bf16.msra.mxu0 %v2103
        %2143 = vmatprep.subr.bf16.mxu0 0
        %2144 = vmatpush1.bf16.msra.mxu0 %v2104
        %2145 = vmatprep.subr.bf16.mxu0 0
        %2146 = vmatpush1.bf16.msra.mxu0 %v2105
        %2147 = vmatprep.subr.bf16.mxu0 0
        %2148 = vmatpush1.bf16.msra.mxu0 %v2106
        %2149 = vmatprep.subr.bf16.mxu0 0
        %2150 = vmatpush1.bf16.msra.mxu0 %v2107
        %2151 = vmatprep.subr.bf16.mxu0 0
        %2152 = vmatpush1.bf16.msra.mxu0 %v2108
        %2153 = vmatprep.subr.bf16.mxu0 0
        %2154 = vmatpush1.bf16.msra.mxu0 %v2109
        %2155 = vmatprep.subr.bf16.mxu0 0
        %2156 = vmatpush1.bf16.msra.mxu0 %v2110
        %2157 = vmatprep.subr.bf16.mxu0 0
        %2158 = vmatpush1.bf16.msra.mxu0 %v2111
        %2159 = vmatprep.subr.bf16.mxu0 0
        %2160 = vmatpush1.bf16.msra.mxu0 %v2112
        %2161 = vmatprep.mubr.bf16.mxu0 %v1993
        %2162 = vmatmul.mubr.bf16.gmra.mrb[0].mxu0 %v1992
        %v2163 = vpop.f32.mrb[0].mxu0
        %v2164 = vadd.f32 %v2031, %v2163
        %v2165 = vpop.f32.mrb[0].mxu0
        %v2166 = vpop.f32.mrb[0].mxu0
        %v2167 = vadd.f32 %v2031, %v2166
        %v2168 = vpop.f32.mrb[0].mxu0
        %2169 = vdwg.mxu0
        %v2170 = vadd.f32 %v2164, %v1802
        %v2171 = vadd.f32 %v2167, %v1803
        %v2172 = vld [vmem:[%s855] sm:$0x1]
        %v2173 = vld [vmem:[%s858] sm:$0x1]
        %2174 = vadd.xlane.f32.xlu0 %v2170
        %v2175 = vpop.xlane.xlu0 %2174
        %2176 = vadd.xlane.f32.xlu0 %v2171
        %v2177 = vpop.xlane.xlu0 %2176
        %v2178 = vmul.f32 %v2175, %v1769
        %v2179 = vmul.f32 %v2177, %v1769
        %v2180 = vsub.f32 %v2170, %v2178
        %v2181 = vsub.f32 %v2171, %v2179
        %v2182 = vmul.f32 %v2180, %v2180
        %v2183 = vmul.f32 %v2181, %v2181
        %2184 = vadd.xlane.f32.xlu0 %v2182
        %v2185 = vpop.xlane.xlu0 %2184
        %2186 = vadd.xlane.f32.xlu0 %v2183
        %v2187 = vpop.xlane.xlu0 %2186
        %v2188 = vmul.f32 %v2185, %v1769
        %v2189 = vmul.f32 %v2187, %v1769
        %v2190 = vadd.f32 %v2188, 1e-12
        %v2191 = vadd.f32 %v2189, 1e-12
        %v2192 = vrsqrt.pop %v2190
        %v2193 = vrsqrt.pop %v2191
        %v2194 = vmul.f32 %v2180, %v2192
        %v2195 = vmul.f32 %v2181, %v2193
        %v2197 = vlaneseq
        %v2198 = vshrl.u32 %v2197, 7
        %v2199 = vsub.s32 0, %v2198
        %v2200 = vrot.slane %v2172, %v2199
        %v2202 = vmul.f32 %v2194, %v2200
        %v2203 = vmul.f32 %v2195, %v2200
        %v2205 = vlaneseq
        %v2206 = vshrl.u32 %v2205, 7
        %v2207 = vsub.s32 0, %v2206
        %v2208 = vrot.slane %v2173, %v2207
        %v2210 = vadd.f32 %v2202, %v2208
        %v2211 = vadd.f32 %v2203, %v2208
        %2212 = vst [vmem:[#allocation2] sm:$0xff] %v2210
        %2213 = vst [vmem:[#allocation2 + $0x8] sm:$0xff] %v2211
        %p2214 = scmp.eq.s32.totalorder %s35, 1
        // Predicated region
        $region121: #{tpu_custom_call.1} parent=83 // pred_check
          %p2215 = pneg %p2214
        $region122: #{tpu_custom_call.1} parent=83 // pred_check_branch
          %2217 = sbr.rel (%p2215) target = $region124
        $region123: #{tpu_custom_call.1} parent=83 // pred_region
          %2218 = vst [vmem:[#allocation15] sm:$0xff] %v2210
          %2219 = vst [vmem:[#allocation15 + $0x8] sm:$0xff] %v2211
          %2220 = vst [vmem:[#allocation16] sm:$0x1] %v2210
          %v2221 = vadd.f32 %v2210, %v2211
          %v2222 = vrot.slane %v2221, 4
          %v2223 = vadd.f32 %v2221, %v2222
          %v2224 = vrot.slane %v2223, 2
          %v2225 = vadd.f32 %v2223, %v2224
          %v2226 = vrot.slane %v2225, 1
          %v2227 = vadd.f32 %v2225, %v2226
          %v2228 = vrcp.pop 16.0
          %v2229 = vmul.f32 %v2227, %v2228
          %2230 = vst [vmem:[#allocation18] sm:$0x1] %v2229
        $region124: #{tpu_custom_call.1} parent=83 // pred_fallthru
          _
        // Predicated region
        $region125: #{tpu_custom_call.1} parent=83 // pred_check
          %p2231 = pneg %p444
        $region126: #{tpu_custom_call.1} parent=83 // pred_check_branch
          %2233 = sbr.rel (%p2231) target = $region128
        $region127: #{tpu_custom_call.1} parent=83 // pred_region
          %s2235 = ssub.s32 256, 256
          %2236 = vsyncadd [#allocation5], %s2235
          %s2237 = sshll.u32 [#allocation15], 4
          %s2238 = int_to_ptr.vmem [resolvable:$true] %s2237
          %2243 = dma.vmem_to_hbm [thread:$0]  %s2238, 256, %s16, [#allocation5], 128, 128, 8
        $region128: #{tpu_custom_call.1} parent=83 // pred_fallthru
          _
        // Predicated region
        $region129: #{tpu_custom_call.1} parent=83 // pred_check
          %p2244 = pneg %p465
        $region130: #{tpu_custom_call.1} parent=83 // pred_check_branch
          %2246 = sbr.rel (%p2244) target = $region132
        $region131: #{tpu_custom_call.1} parent=83 // pred_region
          %s2248 = ssub.s32 16, 16
          %2249 = vsyncadd [#allocation17], %s2248
          %s2251 = sshll.u32 [#allocation16], 4
          %s2252 = int_to_ptr.vmem [resolvable:$true] %s2251
          %2254 = dma.vmem_to_hbm [thread:$0]  %s2252, 16, %s17, [#allocation17]
        $region132: #{tpu_custom_call.1} parent=83 // pred_fallthru
          _
        // Predicated region
        $region133: #{tpu_custom_call.1} parent=83 // pred_check
          %p2255 = pneg %p486
        $region134: #{tpu_custom_call.1} parent=83 // pred_check_branch
          %2257 = sbr.rel (%p2255) target = $region136
        $region135: #{tpu_custom_call.1} parent=83 // pred_region
          %s2259 = ssub.s32 16, 16
          %2260 = vsyncadd [#allocation17], %s2259
          %s2262 = sshll.u32 [#allocation18], 4
          %s2263 = int_to_ptr.vmem [resolvable:$true] %s2262
          %2265 = dma.vmem_to_hbm [thread:$0]  %s2263, 16, %s18, [#allocation17]
        $region136: #{tpu_custom_call.1} parent=83 // pred_fallthru
          _
        // Predicated region
        $region137: #{tpu_custom_call.1} parent=83 // pred_check
          %p2266 = pneg %p444
        $region138: #{tpu_custom_call.1} parent=83 // pred_check_branch
          %2268 = sbr.rel (%p2266) target = $region140
        $region139: #{tpu_custom_call.1} parent=83 // pred_region
          %2269 = dma.done [#allocation5], 256
        $region140: #{tpu_custom_call.1} parent=83 // pred_fallthru
          _
        // Predicated region
        $region141: #{tpu_custom_call.1} parent=83 // pred_check
          %p2270 = pneg %p465
        $region142: #{tpu_custom_call.1} parent=83 // pred_check_branch
          %2272 = sbr.rel (%p2270) target = $region144
        $region143: #{tpu_custom_call.1} parent=83 // pred_region
          %2273 = dma.done [#allocation17], 16
        $region144: #{tpu_custom_call.1} parent=83 // pred_fallthru
          _
        // Predicated region
        $region145: #{tpu_custom_call.1} parent=83 // pred_check
          %p2274 = pneg %p486
        $region146: #{tpu_custom_call.1} parent=83 // pred_check_branch
          %2276 = sbr.rel (%p2274) target = $region148
        $region147: #{tpu_custom_call.1} parent=83 // pred_region
          %2277 = dma.done [#allocation17], 16
        $region148: #{tpu_custom_call.1} parent=83 // pred_fallthru
          _
      $region84: #{tpu_custom_call.1} parent=5 // pred_fallthru
        _
      %p2278 = scmp.le.s32.totalorder 2, %s30
      // Predicated region
      $region149: #{tpu_custom_call.1} parent=5 // pred_check
        %p2279 = pneg %p2278
      $region150: #{tpu_custom_call.1} parent=5 // pred_check_branch
        %2281 = sbr.rel (%p2279) target = $region152
      $region151: #{tpu_custom_call.1} parent=5 // pred_region
        %s2282 = ssub.s32 %s30, 2
      $region152: #{tpu_custom_call.1} parent=5 // pred_fallthru
        _
    $region6: #{tpu_custom_call.1} parent=1 // loop_footer
      %s34 = sadd.s32 1, %s30
    $region7: #{tpu_custom_call.1} parent=1 // loop_footer_branch
      %29 = sbr.rel target = $region3
    $region8: #{tpu_custom_call.1} parent=1 // loop_exit
      _
    %2283 = vsyncpa [#allocation4], 1
    %s2284 = scalar_lea.sflag [#allocation4], 1
    %2285 = vsyncpa %s2284, 1
    %2286 = vsyncpa [#allocation7], 1
    %2287 = vsyncpa [#allocation10], 1
    %2288 = vsyncpa [#allocation5], 1
    %s2289 = scalar_lea.sflag [#allocation5], 1
    %2290 = vsyncpa %s2289, 1
    %2291 = vsyncpa [#allocation17], 1

</llo_original>
